<compile_context>
chip_gen: v5e
topology: v5e:2x2
jax: 0.10.0
libtpu: 0.0.40
codegen_flags: <defaults>
</compile_context>

<pallas_src>
import math

import jax
import jax.numpy as jnp
import numpy as np
from jax.experimental import pallas as pl
from jax.experimental.pallas import tpu as pltpu

# ---- static config (mirrors Res2Conv1D(dim=32, kernel_size=3, dilation=2, scale=8)) ----
B = 2                         # batch
DIM = 32                      # channels
T = 16                        # sequence length
K = 3                         # kernel_size
DIL = 2                       # dilation
SCALE = 8
WIDTH = DIM // SCALE          # 4
NUMS = SCALE - 1              # 7
NUM_PAD = (K // 2) * DIL      # 2  (== math.floor(kernel_size/2) * dilation)
EPS = 1e-5                    # BatchNorm1d default eps
N_VALID = B * T               # 32 valid lanes
N_LANES = 128                 # lane axis padded to one full vreg width


def res2conv1d_kernel(x_ref, w_ref, g_ref, beta_ref, out_ref):
    # x_ref    : (DIM, N_LANES)            channel-major, lane = b*T + t (zero-padded past B*T)
    # w_ref    : (NUMS, WIDTH, K*WIDTH+1)  im2col-packed conv weights + bias column
    # g/beta   : (NUMS, WIDTH, 1)          per-branch BN affine params
    # out_ref  : (DIM, N_LANES)

    # ---- lane bookkeeping, hoisted once and shared by all NUMS branches ----
    lane = jax.lax.broadcasted_iota(jnp.int32, (WIDTH, N_LANES), 1)
    tpos = lane % T                                   # time position of every lane
    shifts = [k * DIL - NUM_PAD for k in range(K)]    # e.g. [-2, 0, 2]
    # tap k at lane (b,t) reads t+shifts[k]; mask zeros the 'same'-padding halo
    # (this also blocks any read of the zero-padded / wrapped-around lanes).
    masks = [(tpos + s >= 0) & (tpos + s < T) for s in shifts]

    ones_row = jnp.ones((1, N_LANES), jnp.float32)    # bias row for the fused matmul
    lane_col = jax.lax.broadcasted_iota(jnp.int32, (N_LANES, 1), 0)
    ones_col = (lane_col < N_VALID).astype(jnp.float32)   # BN-stat mask (excludes lane padding)
    inv_n = 1.0 / N_VALID

    def tap(a, k):
        """tap[c, l] = a[c, l+shifts[k]] if 0 <= tpos(l)+shifts[k] < T else 0."""
        s = shifts[k]
        r = a if s == 0 else pltpu.roll(a, shift=(-s) % N_LANES, axis=1)  # XLU rotate
        return jnp.where(masks[k], r, 0.0)

    sp = None
    for i in range(NUMS):                             # static, fully unrolled
        chunk = x_ref[i * WIDTH:(i + 1) * WIDTH, :]   # (W, N_LANES)
        sp = chunk if i == 0 else sp + chunk

        # ---- dilated 'same' Conv1d + bias: ONE fused MXU matmul over K taps ----
        rhs = jnp.concatenate([tap(sp, k) for k in range(K)] + [ones_row], axis=0)  # (K*W+1, N)
        y = jnp.dot(w_ref[i], rhs, preferred_element_type=jnp.float32)              # (W, N)

        # ---- ReLU ----
        y = jnp.maximum(y, 0.0)

        # ---- BatchNorm1d train-mode forward: per-channel stats over the B*T valid
        #      lanes, biased variance; sums done on the MXU (masked ones column). ----
        s1 = jnp.dot(y, ones_col, preferred_element_type=jnp.float32)        # (W, 1) sum(y)
        s2 = jnp.dot(y * y, ones_col, preferred_element_type=jnp.float32)    # (W, 1) sum(y^2)
        mean = s1 * inv_n
        var = s2 * inv_n - mean * mean
        scale = jax.lax.rsqrt(var + EPS) * g_ref[i]                          # EUP rsqrt
        y = (y - mean) * scale + beta_ref[i]

        out_ref[i * WIDTH:(i + 1) * WIDTH, :] = y     # direct per-branch store
        sp = y                                        # residual carry

    # untouched last split, straight ref-to-ref copy
    out_ref[NUMS * WIDTH:, :] = x_ref[NUMS * WIDTH:, :]


@jax.jit
def res2conv1d(x, w, b, gamma, beta):
    # Wrapper-side layout plumbing (plain JAX, outside the kernel):
    #  * x -> channel-major (DIM, N_LANES): channels on sublanes, b*T+t on lanes,
    #    lane axis zero-padded from B*T to 128 (lane-dense loads/stores)
    #  * conv weights -> im2col packing (NUMS, W_out, K*W_in) + bias column
    #  * BN affine params -> (NUMS, WIDTH, 1) slabs
    x_cm = jnp.transpose(x, (1, 0, 2)).reshape(DIM, B * T)
    x_cm = jnp.pad(x_cm, ((0, 0), (0, N_LANES - B * T)))
    w_packed = jnp.transpose(w, (0, 1, 3, 2)).reshape(NUMS, WIDTH, K * WIDTH)
    w_packed = jnp.concatenate([w_packed, b[:, :, None]], axis=2)     # fold bias into matmul
    g_col = gamma[:, :, None]
    be_col = beta[:, :, None]

    out_cm = pl.pallas_call(
        res2conv1d_kernel,
        out_shape=jax.ShapeDtypeStruct((DIM, N_LANES), jnp.float32),
        in_specs=[pl.BlockSpec(memory_space=pltpu.MemorySpace.VMEM)] * 4,
        out_specs=pl.BlockSpec(memory_space=pltpu.MemorySpace.VMEM),
    )(x_cm, w_packed, g_col, be_col)

    out_cm = out_cm[:, :B * T]
    return jnp.transpose(out_cm.reshape(DIM, B, T), (1, 0, 2))        # back to (B, DIM, T)


def reference(x, w, b, gamma, beta):
    """Pure-JAX reference mirroring the PyTorch forward (train-mode BN)."""
    outs = []
    sp = None
    for i in range(NUMS):
        chunk = x[:, i * WIDTH:(i + 1) * WIDTH, :]
        sp = chunk if i == 0 else sp + chunk
        y = jax.lax.conv_general_dilated(
            sp, w[i], window_strides=(1,), padding=[(NUM_PAD, NUM_PAD)],
            rhs_dilation=(DIL,), dimension_numbers=('NCH', 'OIH', 'NCH'),
            precision=jax.lax.Precision.HIGHEST)
        y = y + b[i][None, :, None]
        y = jnp.maximum(y, 0.0)
        m = jnp.mean(y, axis=(0, 2), keepdims=True)
        v = jnp.mean((y - m) ** 2, axis=(0, 2), keepdims=True)
        sp = (y - m) / jnp.sqrt(v + EPS) * gamma[i][None, :, None] + beta[i][None, :, None]
        outs.append(sp)
    outs.append(x[:, NUMS * WIDTH:, :])
    return jnp.concatenate(outs, axis=1)


if __name__ == "__main__":
    key = jax.random.PRNGKey(0)
    kx, kw, kb = jax.random.split(key, 3)

    # deterministic parameter init (matches PyTorch Conv1d/BatchNorm1d init scheme shapes)
    fan_in = WIDTH * K
    bound = 1.0 / math.sqrt(fan_in)
    w = jax.random.uniform(kw, (NUMS, WIDTH, WIDTH, K), jnp.float32,
                           minval=-bound, maxval=bound)       # (out, in, K) like torch
    b = jax.random.uniform(kb, (NUMS, WIDTH), jnp.float32,
                           minval=-bound, maxval=bound)
    gamma = jnp.ones((NUMS, WIDTH), jnp.float32)              # BN weight init
    beta = jnp.zeros((NUMS, WIDTH), jnp.float32)              # BN bias init

    x = jax.random.normal(kx, (B, DIM, T), jnp.float32)

    out = res2conv1d(x, w, b, gamma, beta)
    out = jax.block_until_ready(out)

    ref = reference(x, w, b, gamma, beta)
    np.testing.assert_allclose(np.asarray(out), np.asarray(ref), rtol=1e-4, atol=1e-4)

    print("KERNEL_OK")
</pallas_src>

<mosaic_0001>
module attributes {stable_mosaic.version = 11 : i64} {
  func.func @res2conv1d_kernel(%arg0: memref<32x128xf32, #tpu.memory_space<vmem>>, %arg1: memref<7x4x13xf32, #tpu.memory_space<vmem>>, %arg2: memref<7x4x1xf32, #tpu.memory_space<vmem>>, %arg3: memref<7x4x1xf32, #tpu.memory_space<vmem>>, %arg4: memref<32x128xf32, #tpu.memory_space<vmem>>) attributes {dimension_semantics = [], scalar_prefetch = 0 : i64, scratch_operands = 0 : i64, tpu.core_type = #tpu.core_type<tc>} {
    %0 = tpu.iota {dimensions = array<i32: 1>} : vector<4x128xi32>
    %c16_i32 = arith.constant 16 : i32
    %c0_i32 = arith.constant 0 : i32
    %1 = arith.cmpi eq, %c16_i32, %c0_i32 : i32
    %c1_i32 = arith.constant 1 : i32
    %2 = arith.select %1, %c1_i32, %c16_i32 : i32
    %3 = vector.broadcast %2 : i32 to vector<4x128xi32>
    %4 = arith.remsi %0, %3 : vector<4x128xi32>
    %c0_i32_0 = arith.constant 0 : i32
    %5 = vector.broadcast %c0_i32_0 : i32 to vector<4x128xi32>
    %6 = arith.cmpi ne, %4, %5 : vector<4x128xi32>
    %c0_i32_1 = arith.constant 0 : i32
    %7 = vector.broadcast %c0_i32_1 : i32 to vector<4x128xi32>
    %8 = arith.cmpi slt, %4, %7 : vector<4x128xi32>
    %c0_i32_2 = arith.constant 0 : i32
    %9 = arith.cmpi slt, %2, %c0_i32_2 : i32
    %10 = vector.broadcast %9 : i1 to vector<4x128xi1>
    %11 = vector.broadcast %10 : vector<4x128xi1> to vector<4x128xi1>
    %12 = arith.xori %8, %11 : vector<4x128xi1>
    %13 = arith.andi %12, %6 : vector<4x128xi1>
    %14 = vector.broadcast %2 : i32 to vector<4x128xi32>
    %15 = arith.addi %4, %14 : vector<4x128xi32>
    %16 = arith.select %13, %15, %4 : vector<4x128xi1>, vector<4x128xi32>
    %c-2_i32 = arith.constant -2 : i32
    %17 = vector.broadcast %c-2_i32 : i32 to vector<4x128xi32>
    %18 = arith.addi %16, %17 : vector<4x128xi32>
    %c0_i32_3 = arith.constant 0 : i32
    %19 = vector.broadcast %c0_i32_3 : i32 to vector<4x128xi32>
    %20 = arith.cmpi sge, %18, %19 : vector<4x128xi32>
    %c-2_i32_4 = arith.constant -2 : i32
    %21 = vector.broadcast %c-2_i32_4 : i32 to vector<4x128xi32>
    %22 = arith.addi %16, %21 : vector<4x128xi32>
    %c16_i32_5 = arith.constant 16 : i32
    %23 = vector.broadcast %c16_i32_5 : i32 to vector<4x128xi32>
    %24 = arith.cmpi slt, %22, %23 : vector<4x128xi32>
    %25 = arith.andi %20, %24 : vector<4x128xi1>
    %c0_i32_6 = arith.constant 0 : i32
    %26 = vector.broadcast %c0_i32_6 : i32 to vector<4x128xi32>
    %27 = arith.addi %16, %26 : vector<4x128xi32>
    %c0_i32_7 = arith.constant 0 : i32
    %28 = vector.broadcast %c0_i32_7 : i32 to vector<4x128xi32>
    %29 = arith.cmpi sge, %27, %28 : vector<4x128xi32>
    %c0_i32_8 = arith.constant 0 : i32
    %30 = vector.broadcast %c0_i32_8 : i32 to vector<4x128xi32>
    %31 = arith.addi %16, %30 : vector<4x128xi32>
    %c16_i32_9 = arith.constant 16 : i32
    %32 = vector.broadcast %c16_i32_9 : i32 to vector<4x128xi32>
    %33 = arith.cmpi slt, %31, %32 : vector<4x128xi32>
    %34 = arith.andi %29, %33 : vector<4x128xi1>
    %c2_i32 = arith.constant 2 : i32
    %35 = vector.broadcast %c2_i32 : i32 to vector<4x128xi32>
    %36 = arith.addi %16, %35 : vector<4x128xi32>
    %c0_i32_10 = arith.constant 0 : i32
    %37 = vector.broadcast %c0_i32_10 : i32 to vector<4x128xi32>
    %38 = arith.cmpi sge, %36, %37 : vector<4x128xi32>
    %c2_i32_11 = arith.constant 2 : i32
    %39 = vector.broadcast %c2_i32_11 : i32 to vector<4x128xi32>
    %40 = arith.addi %16, %39 : vector<4x128xi32>
    %c16_i32_12 = arith.constant 16 : i32
    %41 = vector.broadcast %c16_i32_12 : i32 to vector<4x128xi32>
    %42 = arith.cmpi slt, %40, %41 : vector<4x128xi32>
    %43 = arith.andi %38, %42 : vector<4x128xi1>
    %cst = arith.constant 1.000000e+00 : f32
    %44 = vector.broadcast %cst : f32 to vector<1x128xf32>
    %45 = tpu.iota {dimensions = array<i32: 0>} : vector<128x1xi32>
    %c32_i32 = arith.constant 32 : i32
    %46 = vector.broadcast %c32_i32 : i32 to vector<128x1xi32>
    %47 = arith.cmpi slt, %45, %46 : vector<128x1xi32>
    %48 = arith.extui %47 : vector<128x1xi1> to vector<128x1xi32>
    %49 = arith.sitofp %48 : vector<128x1xi32> to vector<128x1xf32>
    %c0 = arith.constant 0 : index
    %c0_13 = arith.constant 0 : index
    %50 = vector.load %arg0[%c0, %c0_13] : memref<32x128xf32, #tpu.memory_space<vmem>>, vector<4x128xf32>
    %c2_i32_14 = arith.constant 2 : i32
    %51 = tpu.dynamic_rotate %50 by %c2_i32_14 dim 1 : vector<4x128xf32>, i32 -> vector<4x128xf32>
    %cst_15 = arith.constant 0.000000e+00 : f32
    %52 = vector.broadcast %cst_15 : f32 to vector<4x128xf32>
    %53 = arith.select %25, %51, %52 : vector<4x128xi1>, vector<4x128xf32>
    %cst_16 = arith.constant 0.000000e+00 : f32
    %54 = vector.broadcast %cst_16 : f32 to vector<4x128xf32>
    %55 = arith.select %34, %50, %54 : vector<4x128xi1>, vector<4x128xf32>
    %c126_i32 = arith.constant 126 : i32
    %56 = tpu.dynamic_rotate %50 by %c126_i32 dim 1 : vector<4x128xf32>, i32 -> vector<4x128xf32>
    %cst_17 = arith.constant 0.000000e+00 : f32
    %57 = vector.broadcast %cst_17 : f32 to vector<4x128xf32>
    %58 = arith.select %43, %56, %57 : vector<4x128xi1>, vector<4x128xf32>
    %59 = tpu.concatenate %53, %55, %58, %44 in 0 : vector<4x128xf32>, vector<4x128xf32>, vector<4x128xf32>, vector<1x128xf32> -> vector<13x128xf32>
    %c0_18 = arith.constant 0 : index
    %c0_19 = arith.constant 0 : index
    %c0_20 = arith.constant 0 : index
    %60 = vector.load %arg1[%c0_18, %c0_19, %c0_20] : memref<7x4x13xf32, #tpu.memory_space<vmem>>, vector<1x4x13xf32>
    %61 = vector.shape_cast %60 : vector<1x4x13xf32> to vector<4x13xf32>
    %cst_21 = arith.constant dense<0.000000e+00> : vector<4x128xf32>
    %62 = tpu.matmul %61, %59, %cst_21 {dimension_numbers = #tpu.dot_dimension_numbers<[1], [0], [0], [1], [0, 0, 1, 1], [], []>} : vector<4x13xf32>, vector<13x128xf32>, vector<4x128xf32> -> vector<4x128xf32>
    %cst_22 = arith.constant 0.000000e+00 : f32
    %63 = vector.broadcast %cst_22 : f32 to vector<4x128xf32>
    %64 = arith.maximumf %62, %63 : vector<4x128xf32>
    %cst_23 = arith.constant dense<0.000000e+00> : vector<4x1xf32>
    %65 = tpu.matmul %64, %49, %cst_23 {dimension_numbers = #tpu.dot_dimension_numbers<[1], [0], [0], [1], [0, 0, 1, 1], [], []>} : vector<4x128xf32>, vector<128x1xf32>, vector<4x1xf32> -> vector<4x1xf32>
    %66 = arith.mulf %64, %64 : vector<4x128xf32>
    %cst_24 = arith.constant dense<0.000000e+00> : vector<4x1xf32>
    %67 = tpu.matmul %66, %49, %cst_24 {dimension_numbers = #tpu.dot_dimension_numbers<[1], [0], [0], [1], [0, 0, 1, 1], [], []>} : vector<4x128xf32>, vector<128x1xf32>, vector<4x1xf32> -> vector<4x1xf32>
    %cst_25 = arith.constant 3.125000e-02 : f32
    %68 = vector.broadcast %cst_25 : f32 to vector<4x1xf32>
    %69 = arith.mulf %65, %68 : vector<4x1xf32>
    %cst_26 = arith.constant 3.125000e-02 : f32
    %70 = vector.broadcast %cst_26 : f32 to vector<4x1xf32>
    %71 = arith.mulf %67, %70 : vector<4x1xf32>
    %72 = arith.mulf %69, %69 : vector<4x1xf32>
    %73 = arith.subf %71, %72 : vector<4x1xf32>
    %cst_27 = arith.constant 9.99999974E-6 : f32
    %74 = vector.broadcast %cst_27 : f32 to vector<4x1xf32>
    %75 = arith.addf %73, %74 : vector<4x1xf32>
    %76 = math.rsqrt %75 : vector<4x1xf32>
    %c0_28 = arith.constant 0 : index
    %c0_29 = arith.constant 0 : index
    %c0_30 = arith.constant 0 : index
    %77 = vector.load %arg2[%c0_28, %c0_29, %c0_30] : memref<7x4x1xf32, #tpu.memory_space<vmem>>, vector<1x4x1xf32>
    %78 = vector.shape_cast %77 : vector<1x4x1xf32> to vector<4x1xf32>
    %79 = arith.mulf %76, %78 : vector<4x1xf32>
    %80 = vector.broadcast %69 : vector<4x1xf32> to vector<4x128xf32>
    %81 = arith.subf %64, %80 : vector<4x128xf32>
    %82 = vector.broadcast %79 : vector<4x1xf32> to vector<4x128xf32>
    %83 = arith.mulf %81, %82 : vector<4x128xf32>
    %c0_31 = arith.constant 0 : index
    %c0_32 = arith.constant 0 : index
    %c0_33 = arith.constant 0 : index
    %84 = vector.load %arg3[%c0_31, %c0_32, %c0_33] : memref<7x4x1xf32, #tpu.memory_space<vmem>>, vector<1x4x1xf32>
    %85 = vector.shape_cast %84 : vector<1x4x1xf32> to vector<4x1xf32>
    %86 = vector.broadcast %85 : vector<4x1xf32> to vector<4x128xf32>
    %87 = arith.addf %83, %86 : vector<4x128xf32>
    %c0_34 = arith.constant 0 : index
    %c0_35 = arith.constant 0 : index
    %88 = vector.load %arg4[%c0_34, %c0_35] : memref<32x128xf32, #tpu.memory_space<vmem>>, vector<4x128xf32>
    tpu.vector_store %arg4[%c0_34, %c0_35], %87 {strides = array<i32>} : memref<32x128xf32, #tpu.memory_space<vmem>>, vector<4x128xf32>,
    %c4 = arith.constant 4 : index
    %c0_36 = arith.constant 0 : index
    %89 = vector.load %arg0[%c4, %c0_36] : memref<32x128xf32, #tpu.memory_space<vmem>>, vector<4x128xf32>
    %90 = arith.addf %87, %89 : vector<4x128xf32>
    %c2_i32_37 = arith.constant 2 : i32
    %91 = tpu.dynamic_rotate %90 by %c2_i32_37 dim 1 : vector<4x128xf32>, i32 -> vector<4x128xf32>
    %cst_38 = arith.constant 0.000000e+00 : f32
    %92 = vector.broadcast %cst_38 : f32 to vector<4x128xf32>
    %93 = arith.select %25, %91, %92 : vector<4x128xi1>, vector<4x128xf32>
    %cst_39 = arith.constant 0.000000e+00 : f32
    %94 = vector.broadcast %cst_39 : f32 to vector<4x128xf32>
    %95 = arith.select %34, %90, %94 : vector<4x128xi1>, vector<4x128xf32>
    %c126_i32_40 = arith.constant 126 : i32
    %96 = tpu.dynamic_rotate %90 by %c126_i32_40 dim 1 : vector<4x128xf32>, i32 -> vector<4x128xf32>
    %cst_41 = arith.constant 0.000000e+00 : f32
    %97 = vector.broadcast %cst_41 : f32 to vector<4x128xf32>
    %98 = arith.select %43, %96, %97 : vector<4x128xi1>, vector<4x128xf32>
    %99 = tpu.concatenate %93, %95, %98, %44 in 0 : vector<4x128xf32>, vector<4x128xf32>, vector<4x128xf32>, vector<1x128xf32> -> vector<13x128xf32>
    %c1 = arith.constant 1 : index
    %c0_42 = arith.constant 0 : index
    %c0_43 = arith.constant 0 : index
    %100 = vector.load %arg1[%c1, %c0_42, %c0_43] : memref<7x4x13xf32, #tpu.memory_space<vmem>>, vector<1x4x13xf32>
    %101 = vector.shape_cast %100 : vector<1x4x13xf32> to vector<4x13xf32>
    %cst_44 = arith.constant dense<0.000000e+00> : vector<4x128xf32>
    %102 = tpu.matmul %101, %99, %cst_44 {dimension_numbers = #tpu.dot_dimension_numbers<[1], [0], [0], [1], [0, 0, 1, 1], [], []>} : vector<4x13xf32>, vector<13x128xf32>, vector<4x128xf32> -> vector<4x128xf32>
    %cst_45 = arith.constant 0.000000e+00 : f32
    %103 = vector.broadcast %cst_45 : f32 to vector<4x128xf32>
    %104 = arith.maximumf %102, %103 : vector<4x128xf32>
    %cst_46 = arith.constant dense<0.000000e+00> : vector<4x1xf32>
    %105 = tpu.matmul %104, %49, %cst_46 {dimension_numbers = #tpu.dot_dimension_numbers<[1], [0], [0], [1], [0, 0, 1, 1], [], []>} : vector<4x128xf32>, vector<128x1xf32>, vector<4x1xf32> -> vector<4x1xf32>
    %106 = arith.mulf %104, %104 : vector<4x128xf32>
    %cst_47 = arith.constant dense<0.000000e+00> : vector<4x1xf32>
    %107 = tpu.matmul %106, %49, %cst_47 {dimension_numbers = #tpu.dot_dimension_numbers<[1], [0], [0], [1], [0, 0, 1, 1], [], []>} : vector<4x128xf32>, vector<128x1xf32>, vector<4x1xf32> -> vector<4x1xf32>
    %cst_48 = arith.constant 3.125000e-02 : f32
    %108 = vector.broadcast %cst_48 : f32 to vector<4x1xf32>
    %109 = arith.mulf %105, %108 : vector<4x1xf32>
    %cst_49 = arith.constant 3.125000e-02 : f32
    %110 = vector.broadcast %cst_49 : f32 to vector<4x1xf32>
    %111 = arith.mulf %107, %110 : vector<4x1xf32>
    %112 = arith.mulf %109, %109 : vector<4x1xf32>
    %113 = arith.subf %111, %112 : vector<4x1xf32>
    %cst_50 = arith.constant 9.99999974E-6 : f32
    %114 = vector.broadcast %cst_50 : f32 to vector<4x1xf32>
    %115 = arith.addf %113, %114 : vector<4x1xf32>
    %116 = math.rsqrt %115 : vector<4x1xf32>
    %c1_51 = arith.constant 1 : index
    %c0_52 = arith.constant 0 : index
    %c0_53 = arith.constant 0 : index
    %117 = vector.load %arg2[%c1_51, %c0_52, %c0_53] : memref<7x4x1xf32, #tpu.memory_space<vmem>>, vector<1x4x1xf32>
    %118 = vector.shape_cast %117 : vector<1x4x1xf32> to vector<4x1xf32>
    %119 = arith.mulf %116, %118 : vector<4x1xf32>
    %120 = vector.broadcast %109 : vector<4x1xf32> to vector<4x128xf32>
    %121 = arith.subf %104, %120 : vector<4x128xf32>
    %122 = vector.broadcast %119 : vector<4x1xf32> to vector<4x128xf32>
    %123 = arith.mulf %121, %122 : vector<4x128xf32>
    %c1_54 = arith.constant 1 : index
    %c0_55 = arith.constant 0 : index
    %c0_56 = arith.constant 0 : index
    %124 = vector.load %arg3[%c1_54, %c0_55, %c0_56] : memref<7x4x1xf32, #tpu.memory_space<vmem>>, vector<1x4x1xf32>
    %125 = vector.shape_cast %124 : vector<1x4x1xf32> to vector<4x1xf32>
    %126 = vector.broadcast %125 : vector<4x1xf32> to vector<4x128xf32>
    %127 = arith.addf %123, %126 : vector<4x128xf32>
    %c4_57 = arith.constant 4 : index
    %c0_58 = arith.constant 0 : index
    %128 = vector.load %arg4[%c4_57, %c0_58] : memref<32x128xf32, #tpu.memory_space<vmem>>, vector<4x128xf32>
    tpu.vector_store %arg4[%c4_57, %c0_58], %127 {strides = array<i32>} : memref<32x128xf32, #tpu.memory_space<vmem>>, vector<4x128xf32>,
    %c8 = arith.constant 8 : index
    %c0_59 = arith.constant 0 : index
    %129 = vector.load %arg0[%c8, %c0_59] : memref<32x128xf32, #tpu.memory_space<vmem>>, vector<4x128xf32>
    %130 = arith.addf %127, %129 : vector<4x128xf32>
    %c2_i32_60 = arith.constant 2 : i32
    %131 = tpu.dynamic_rotate %130 by %c2_i32_60 dim 1 : vector<4x128xf32>, i32 -> vector<4x128xf32>
    %cst_61 = arith.constant 0.000000e+00 : f32
    %132 = vector.broadcast %cst_61 : f32 to vector<4x128xf32>
    %133 = arith.select %25, %131, %132 : vector<4x128xi1>, vector<4x128xf32>
    %cst_62 = arith.constant 0.000000e+00 : f32
    %134 = vector.broadcast %cst_62 : f32 to vector<4x128xf32>
    %135 = arith.select %34, %130, %134 : vector<4x128xi1>, vector<4x128xf32>
    %c126_i32_63 = arith.constant 126 : i32
    %136 = tpu.dynamic_rotate %130 by %c126_i32_63 dim 1 : vector<4x128xf32>, i32 -> vector<4x128xf32>
    %cst_64 = arith.constant 0.000000e+00 : f32
    %137 = vector.broadcast %cst_64 : f32 to vector<4x128xf32>
    %138 = arith.select %43, %136, %137 : vector<4x128xi1>, vector<4x128xf32>
    %139 = tpu.concatenate %133, %135, %138, %44 in 0 : vector<4x128xf32>, vector<4x128xf32>, vector<4x128xf32>, vector<1x128xf32> -> vector<13x128xf32>
    %c2 = arith.constant 2 : index
    %c0_65 = arith.constant 0 : index
    %c0_66 = arith.constant 0 : index
    %140 = vector.load %arg1[%c2, %c0_65, %c0_66] : memref<7x4x13xf32, #tpu.memory_space<vmem>>, vector<1x4x13xf32>
    %141 = vector.shape_cast %140 : vector<1x4x13xf32> to vector<4x13xf32>
    %cst_67 = arith.constant dense<0.000000e+00> : vector<4x128xf32>
    %142 = tpu.matmul %141, %139, %cst_67 {dimension_numbers = #tpu.dot_dimension_numbers<[1], [0], [0], [1], [0, 0, 1, 1], [], []>} : vector<4x13xf32>, vector<13x128xf32>, vector<4x128xf32> -> vector<4x128xf32>
    %cst_68 = arith.constant 0.000000e+00 : f32
    %143 = vector.broadcast %cst_68 : f32 to vector<4x128xf32>
    %144 = arith.maximumf %142, %143 : vector<4x128xf32>
    %cst_69 = arith.constant dense<0.000000e+00> : vector<4x1xf32>
    %145 = tpu.matmul %144, %49, %cst_69 {dimension_numbers = #tpu.dot_dimension_numbers<[1], [0], [0], [1], [0, 0, 1, 1], [], []>} : vector<4x128xf32>, vector<128x1xf32>, vector<4x1xf32> -> vector<4x1xf32>
    %146 = arith.mulf %144, %144 : vector<4x128xf32>
    %cst_70 = arith.constant dense<0.000000e+00> : vector<4x1xf32>
    %147 = tpu.matmul %146, %49, %cst_70 {dimension_numbers = #tpu.dot_dimension_numbers<[1], [0], [0], [1], [0, 0, 1, 1], [], []>} : vector<4x128xf32>, vector<128x1xf32>, vector<4x1xf32> -> vector<4x1xf32>
    %cst_71 = arith.constant 3.125000e-02 : f32
    %148 = vector.broadcast %cst_71 : f32 to vector<4x1xf32>
    %149 = arith.mulf %145, %148 : vector<4x1xf32>
    %cst_72 = arith.constant 3.125000e-02 : f32
    %150 = vector.broadcast %cst_72 : f32 to vector<4x1xf32>
    %151 = arith.mulf %147, %150 : vector<4x1xf32>
    %152 = arith.mulf %149, %149 : vector<4x1xf32>
    %153 = arith.subf %151, %152 : vector<4x1xf32>
    %cst_73 = arith.constant 9.99999974E-6 : f32
    %154 = vector.broadcast %cst_73 : f32 to vector<4x1xf32>
    %155 = arith.addf %153, %154 : vector<4x1xf32>
    %156 = math.rsqrt %155 : vector<4x1xf32>
    %c2_74 = arith.constant 2 : index
    %c0_75 = arith.constant 0 : index
    %c0_76 = arith.constant 0 : index
    %157 = vector.load %arg2[%c2_74, %c0_75, %c0_76] : memref<7x4x1xf32, #tpu.memory_space<vmem>>, vector<1x4x1xf32>
    %158 = vector.shape_cast %157 : vector<1x4x1xf32> to vector<4x1xf32>
    %159 = arith.mulf %156, %158 : vector<4x1xf32>
    %160 = vector.broadcast %149 : vector<4x1xf32> to vector<4x128xf32>
    %161 = arith.subf %144, %160 : vector<4x128xf32>
    %162 = vector.broadcast %159 : vector<4x1xf32> to vector<4x128xf32>
    %163 = arith.mulf %161, %162 : vector<4x128xf32>
    %c2_77 = arith.constant 2 : index
    %c0_78 = arith.constant 0 : index
    %c0_79 = arith.constant 0 : index
    %164 = vector.load %arg3[%c2_77, %c0_78, %c0_79] : memref<7x4x1xf32, #tpu.memory_space<vmem>>, vector<1x4x1xf32>
    %165 = vector.shape_cast %164 : vector<1x4x1xf32> to vector<4x1xf32>
    %166 = vector.broadcast %165 : vector<4x1xf32> to vector<4x128xf32>
    %167 = arith.addf %163, %166 : vector<4x128xf32>
    %c8_80 = arith.constant 8 : index
    %c0_81 = arith.constant 0 : index
    %168 = vector.load %arg4[%c8_80, %c0_81] : memref<32x128xf32, #tpu.memory_space<vmem>>, vector<4x128xf32>
    tpu.vector_store %arg4[%c8_80, %c0_81], %167 {strides = array<i32>} : memref<32x128xf32, #tpu.memory_space<vmem>>, vector<4x128xf32>,
    %c12 = arith.constant 12 : index
    %c0_82 = arith.constant 0 : index
    %169 = vector.load %arg0[%c12, %c0_82] : memref<32x128xf32, #tpu.memory_space<vmem>>, vector<4x128xf32>
    %170 = arith.addf %167, %169 : vector<4x128xf32>
    %c2_i32_83 = arith.constant 2 : i32
    %171 = tpu.dynamic_rotate %170 by %c2_i32_83 dim 1 : vector<4x128xf32>, i32 -> vector<4x128xf32>
    %cst_84 = arith.constant 0.000000e+00 : f32
    %172 = vector.broadcast %cst_84 : f32 to vector<4x128xf32>
    %173 = arith.select %25, %171, %172 : vector<4x128xi1>, vector<4x128xf32>
    %cst_85 = arith.constant 0.000000e+00 : f32
    %174 = vector.broadcast %cst_85 : f32 to vector<4x128xf32>
    %175 = arith.select %34, %170, %174 : vector<4x128xi1>, vector<4x128xf32>
    %c126_i32_86 = arith.constant 126 : i32
    %176 = tpu.dynamic_rotate %170 by %c126_i32_86 dim 1 : vector<4x128xf32>, i32 -> vector<4x128xf32>
    %cst_87 = arith.constant 0.000000e+00 : f32
    %177 = vector.broadcast %cst_87 : f32 to vector<4x128xf32>
    %178 = arith.select %43, %176, %177 : vector<4x128xi1>, vector<4x128xf32>
    %179 = tpu.concatenate %173, %175, %178, %44 in 0 : vector<4x128xf32>, vector<4x128xf32>, vector<4x128xf32>, vector<1x128xf32> -> vector<13x128xf32>
    %c3 = arith.constant 3 : index
    %c0_88 = arith.constant 0 : index
    %c0_89 = arith.constant 0 : index
    %180 = vector.load %arg1[%c3, %c0_88, %c0_89] : memref<7x4x13xf32, #tpu.memory_space<vmem>>, vector<1x4x13xf32>
    %181 = vector.shape_cast %180 : vector<1x4x13xf32> to vector<4x13xf32>
    %cst_90 = arith.constant dense<0.000000e+00> : vector<4x128xf32>
    %182 = tpu.matmul %181, %179, %cst_90 {dimension_numbers = #tpu.dot_dimension_numbers<[1], [0], [0], [1], [0, 0, 1, 1], [], []>} : vector<4x13xf32>, vector<13x128xf32>, vector<4x128xf32> -> vector<4x128xf32>
    %cst_91 = arith.constant 0.000000e+00 : f32
    %183 = vector.broadcast %cst_91 : f32 to vector<4x128xf32>
    %184 = arith.maximumf %182, %183 : vector<4x128xf32>
    %cst_92 = arith.constant dense<0.000000e+00> : vector<4x1xf32>
    %185 = tpu.matmul %184, %49, %cst_92 {dimension_numbers = #tpu.dot_dimension_numbers<[1], [0], [0], [1], [0, 0, 1, 1], [], []>} : vector<4x128xf32>, vector<128x1xf32>, vector<4x1xf32> -> vector<4x1xf32>
    %186 = arith.mulf %184, %184 : vector<4x128xf32>
    %cst_93 = arith.constant dense<0.000000e+00> : vector<4x1xf32>
    %187 = tpu.matmul %186, %49, %cst_93 {dimension_numbers = #tpu.dot_dimension_numbers<[1], [0], [0], [1], [0, 0, 1, 1], [], []>} : vector<4x128xf32>, vector<128x1xf32>, vector<4x1xf32> -> vector<4x1xf32>
    %cst_94 = arith.constant 3.125000e-02 : f32
    %188 = vector.broadcast %cst_94 : f32 to vector<4x1xf32>
    %189 = arith.mulf %185, %188 : vector<4x1xf32>
    %cst_95 = arith.constant 3.125000e-02 : f32
    %190 = vector.broadcast %cst_95 : f32 to vector<4x1xf32>
    %191 = arith.mulf %187, %190 : vector<4x1xf32>
    %192 = arith.mulf %189, %189 : vector<4x1xf32>
    %193 = arith.subf %191, %192 : vector<4x1xf32>
    %cst_96 = arith.constant 9.99999974E-6 : f32
    %194 = vector.broadcast %cst_96 : f32 to vector<4x1xf32>
    %195 = arith.addf %193, %194 : vector<4x1xf32>
    %196 = math.rsqrt %195 : vector<4x1xf32>
    %c3_97 = arith.constant 3 : index
    %c0_98 = arith.constant 0 : index
    %c0_99 = arith.constant 0 : index
    %197 = vector.load %arg2[%c3_97, %c0_98, %c0_99] : memref<7x4x1xf32, #tpu.memory_space<vmem>>, vector<1x4x1xf32>
    %198 = vector.shape_cast %197 : vector<1x4x1xf32> to vector<4x1xf32>
    %199 = arith.mulf %196, %198 : vector<4x1xf32>
    %200 = vector.broadcast %189 : vector<4x1xf32> to vector<4x128xf32>
    %201 = arith.subf %184, %200 : vector<4x128xf32>
    %202 = vector.broadcast %199 : vector<4x1xf32> to vector<4x128xf32>
    %203 = arith.mulf %201, %202 : vector<4x128xf32>
    %c3_100 = arith.constant 3 : index
    %c0_101 = arith.constant 0 : index
    %c0_102 = arith.constant 0 : index
    %204 = vector.load %arg3[%c3_100, %c0_101, %c0_102] : memref<7x4x1xf32, #tpu.memory_space<vmem>>, vector<1x4x1xf32>
    %205 = vector.shape_cast %204 : vector<1x4x1xf32> to vector<4x1xf32>
    %206 = vector.broadcast %205 : vector<4x1xf32> to vector<4x128xf32>
    %207 = arith.addf %203, %206 : vector<4x128xf32>
    %c12_103 = arith.constant 12 : index
    %c0_104 = arith.constant 0 : index
    %208 = vector.load %arg4[%c12_103, %c0_104] : memref<32x128xf32, #tpu.memory_space<vmem>>, vector<4x128xf32>
    tpu.vector_store %arg4[%c12_103, %c0_104], %207 {strides = array<i32>} : memref<32x128xf32, #tpu.memory_space<vmem>>, vector<4x128xf32>,
    %c16 = arith.constant 16 : index
    %c0_105 = arith.constant 0 : index
    %209 = vector.load %arg0[%c16, %c0_105] : memref<32x128xf32, #tpu.memory_space<vmem>>, vector<4x128xf32>
    %210 = arith.addf %207, %209 : vector<4x128xf32>
    %c2_i32_106 = arith.constant 2 : i32
    %211 = tpu.dynamic_rotate %210 by %c2_i32_106 dim 1 : vector<4x128xf32>, i32 -> vector<4x128xf32>
    %cst_107 = arith.constant 0.000000e+00 : f32
    %212 = vector.broadcast %cst_107 : f32 to vector<4x128xf32>
    %213 = arith.select %25, %211, %212 : vector<4x128xi1>, vector<4x128xf32>
    %cst_108 = arith.constant 0.000000e+00 : f32
    %214 = vector.broadcast %cst_108 : f32 to vector<4x128xf32>
    %215 = arith.select %34, %210, %214 : vector<4x128xi1>, vector<4x128xf32>
    %c126_i32_109 = arith.constant 126 : i32
    %216 = tpu.dynamic_rotate %210 by %c126_i32_109 dim 1 : vector<4x128xf32>, i32 -> vector<4x128xf32>
    %cst_110 = arith.constant 0.000000e+00 : f32
    %217 = vector.broadcast %cst_110 : f32 to vector<4x128xf32>
    %218 = arith.select %43, %216, %217 : vector<4x128xi1>, vector<4x128xf32>
    %219 = tpu.concatenate %213, %215, %218, %44 in 0 : vector<4x128xf32>, vector<4x128xf32>, vector<4x128xf32>, vector<1x128xf32> -> vector<13x128xf32>
    %c4_111 = arith.constant 4 : index
    %c0_112 = arith.constant 0 : index
    %c0_113 = arith.constant 0 : index
    %220 = vector.load %arg1[%c4_111, %c0_112, %c0_113] : memref<7x4x13xf32, #tpu.memory_space<vmem>>, vector<1x4x13xf32>
    %221 = vector.shape_cast %220 : vector<1x4x13xf32> to vector<4x13xf32>
    %cst_114 = arith.constant dense<0.000000e+00> : vector<4x128xf32>
    %222 = tpu.matmul %221, %219, %cst_114 {dimension_numbers = #tpu.dot_dimension_numbers<[1], [0], [0], [1], [0, 0, 1, 1], [], []>} : vector<4x13xf32>, vector<13x128xf32>, vector<4x128xf32> -> vector<4x128xf32>
    %cst_115 = arith.constant 0.000000e+00 : f32
    %223 = vector.broadcast %cst_115 : f32 to vector<4x128xf32>
    %224 = arith.maximumf %222, %223 : vector<4x128xf32>
    %cst_116 = arith.constant dense<0.000000e+00> : vector<4x1xf32>
    %225 = tpu.matmul %224, %49, %cst_116 {dimension_numbers = #tpu.dot_dimension_numbers<[1], [0], [0], [1], [0, 0, 1, 1], [], []>} : vector<4x128xf32>, vector<128x1xf32>, vector<4x1xf32> -> vector<4x1xf32>
    %226 = arith.mulf %224, %224 : vector<4x128xf32>
    %cst_117 = arith.constant dense<0.000000e+00> : vector<4x1xf32>
    %227 = tpu.matmul %226, %49, %cst_117 {dimension_numbers = #tpu.dot_dimension_numbers<[1], [0], [0], [1], [0, 0, 1, 1], [], []>} : vector<4x128xf32>, vector<128x1xf32>, vector<4x1xf32> -> vector<4x1xf32>
    %cst_118 = arith.constant 3.125000e-02 : f32
    %228 = vector.broadcast %cst_118 : f32 to vector<4x1xf32>
    %229 = arith.mulf %225, %228 : vector<4x1xf32>
    %cst_119 = arith.constant 3.125000e-02 : f32
    %230 = vector.broadcast %cst_119 : f32 to vector<4x1xf32>
    %231 = arith.mulf %227, %230 : vector<4x1xf32>
    %232 = arith.mulf %229, %229 : vector<4x1xf32>
    %233 = arith.subf %231, %232 : vector<4x1xf32>
    %cst_120 = arith.constant 9.99999974E-6 : f32
    %234 = vector.broadcast %cst_120 : f32 to vector<4x1xf32>
    %235 = arith.addf %233, %234 : vector<4x1xf32>
    %236 = math.rsqrt %235 : vector<4x1xf32>
    %c4_121 = arith.constant 4 : index
    %c0_122 = arith.constant 0 : index
    %c0_123 = arith.constant 0 : index
    %237 = vector.load %arg2[%c4_121, %c0_122, %c0_123] : memref<7x4x1xf32, #tpu.memory_space<vmem>>, vector<1x4x1xf32>
    %238 = vector.shape_cast %237 : vector<1x4x1xf32> to vector<4x1xf32>
    %239 = arith.mulf %236, %238 : vector<4x1xf32>
    %240 = vector.broadcast %229 : vector<4x1xf32> to vector<4x128xf32>
    %241 = arith.subf %224, %240 : vector<4x128xf32>
    %242 = vector.broadcast %239 : vector<4x1xf32> to vector<4x128xf32>
    %243 = arith.mulf %241, %242 : vector<4x128xf32>
    %c4_124 = arith.constant 4 : index
    %c0_125 = arith.constant 0 : index
    %c0_126 = arith.constant 0 : index
    %244 = vector.load %arg3[%c4_124, %c0_125, %c0_126] : memref<7x4x1xf32, #tpu.memory_space<vmem>>, vector<1x4x1xf32>
    %245 = vector.shape_cast %244 : vector<1x4x1xf32> to vector<4x1xf32>
    %246 = vector.broadcast %245 : vector<4x1xf32> to vector<4x128xf32>
    %247 = arith.addf %243, %246 : vector<4x128xf32>
    %c16_127 = arith.constant 16 : index
    %c0_128 = arith.constant 0 : index
    %248 = vector.load %arg4[%c16_127, %c0_128] : memref<32x128xf32, #tpu.memory_space<vmem>>, vector<4x128xf32>
    tpu.vector_store %arg4[%c16_127, %c0_128], %247 {strides = array<i32>} : memref<32x128xf32, #tpu.memory_space<vmem>>, vector<4x128xf32>,
    %c20 = arith.constant 20 : index
    %c0_129 = arith.constant 0 : index
    %249 = vector.load %arg0[%c20, %c0_129] : memref<32x128xf32, #tpu.memory_space<vmem>>, vector<4x128xf32>
    %250 = arith.addf %247, %249 : vector<4x128xf32>
    %c2_i32_130 = arith.constant 2 : i32
    %251 = tpu.dynamic_rotate %250 by %c2_i32_130 dim 1 : vector<4x128xf32>, i32 -> vector<4x128xf32>
    %cst_131 = arith.constant 0.000000e+00 : f32
    %252 = vector.broadcast %cst_131 : f32 to vector<4x128xf32>
    %253 = arith.select %25, %251, %252 : vector<4x128xi1>, vector<4x128xf32>
    %cst_132 = arith.constant 0.000000e+00 : f32
    %254 = vector.broadcast %cst_132 : f32 to vector<4x128xf32>
    %255 = arith.select %34, %250, %254 : vector<4x128xi1>, vector<4x128xf32>
    %c126_i32_133 = arith.constant 126 : i32
    %256 = tpu.dynamic_rotate %250 by %c126_i32_133 dim 1 : vector<4x128xf32>, i32 -> vector<4x128xf32>
    %cst_134 = arith.constant 0.000000e+00 : f32
    %257 = vector.broadcast %cst_134 : f32 to vector<4x128xf32>
    %258 = arith.select %43, %256, %257 : vector<4x128xi1>, vector<4x128xf32>
    %259 = tpu.concatenate %253, %255, %258, %44 in 0 : vector<4x128xf32>, vector<4x128xf32>, vector<4x128xf32>, vector<1x128xf32> -> vector<13x128xf32>
    %c5 = arith.constant 5 : index
    %c0_135 = arith.constant 0 : index
    %c0_136 = arith.constant 0 : index
    %260 = vector.load %arg1[%c5, %c0_135, %c0_136] : memref<7x4x13xf32, #tpu.memory_space<vmem>>, vector<1x4x13xf32>
    %261 = vector.shape_cast %260 : vector<1x4x13xf32> to vector<4x13xf32>
    %cst_137 = arith.constant dense<0.000000e+00> : vector<4x128xf32>
    %262 = tpu.matmul %261, %259, %cst_137 {dimension_numbers = #tpu.dot_dimension_numbers<[1], [0], [0], [1], [0, 0, 1, 1], [], []>} : vector<4x13xf32>, vector<13x128xf32>, vector<4x128xf32> -> vector<4x128xf32>
    %cst_138 = arith.constant 0.000000e+00 : f32
    %263 = vector.broadcast %cst_138 : f32 to vector<4x128xf32>
    %264 = arith.maximumf %262, %263 : vector<4x128xf32>
    %cst_139 = arith.constant dense<0.000000e+00> : vector<4x1xf32>
    %265 = tpu.matmul %264, %49, %cst_139 {dimension_numbers = #tpu.dot_dimension_numbers<[1], [0], [0], [1], [0, 0, 1, 1], [], []>} : vector<4x128xf32>, vector<128x1xf32>, vector<4x1xf32> -> vector<4x1xf32>
    %266 = arith.mulf %264, %264 : vector<4x128xf32>
    %cst_140 = arith.constant dense<0.000000e+00> : vector<4x1xf32>
    %267 = tpu.matmul %266, %49, %cst_140 {dimension_numbers = #tpu.dot_dimension_numbers<[1], [0], [0], [1], [0, 0, 1, 1], [], []>} : vector<4x128xf32>, vector<128x1xf32>, vector<4x1xf32> -> vector<4x1xf32>
    %cst_141 = arith.constant 3.125000e-02 : f32
    %268 = vector.broadcast %cst_141 : f32 to vector<4x1xf32>
    %269 = arith.mulf %265, %268 : vector<4x1xf32>
    %cst_142 = arith.constant 3.125000e-02 : f32
    %270 = vector.broadcast %cst_142 : f32 to vector<4x1xf32>
    %271 = arith.mulf %267, %270 : vector<4x1xf32>
    %272 = arith.mulf %269, %269 : vector<4x1xf32>
    %273 = arith.subf %271, %272 : vector<4x1xf32>
    %cst_143 = arith.constant 9.99999974E-6 : f32
    %274 = vector.broadcast %cst_143 : f32 to vector<4x1xf32>
    %275 = arith.addf %273, %274 : vector<4x1xf32>
    %276 = math.rsqrt %275 : vector<4x1xf32>
    %c5_144 = arith.constant 5 : index
    %c0_145 = arith.constant 0 : index
    %c0_146 = arith.constant 0 : index
    %277 = vector.load %arg2[%c5_144, %c0_145, %c0_146] : memref<7x4x1xf32, #tpu.memory_space<vmem>>, vector<1x4x1xf32>
    %278 = vector.shape_cast %277 : vector<1x4x1xf32> to vector<4x1xf32>
    %279 = arith.mulf %276, %278 : vector<4x1xf32>
    %280 = vector.broadcast %269 : vector<4x1xf32> to vector<4x128xf32>
    %281 = arith.subf %264, %280 : vector<4x128xf32>
    %282 = vector.broadcast %279 : vector<4x1xf32> to vector<4x128xf32>
    %283 = arith.mulf %281, %282 : vector<4x128xf32>
    %c5_147 = arith.constant 5 : index
    %c0_148 = arith.constant 0 : index
    %c0_149 = arith.constant 0 : index
    %284 = vector.load %arg3[%c5_147, %c0_148, %c0_149] : memref<7x4x1xf32, #tpu.memory_space<vmem>>, vector<1x4x1xf32>
    %285 = vector.shape_cast %284 : vector<1x4x1xf32> to vector<4x1xf32>
    %286 = vector.broadcast %285 : vector<4x1xf32> to vector<4x128xf32>
    %287 = arith.addf %283, %286 : vector<4x128xf32>
    %c20_150 = arith.constant 20 : index
    %c0_151 = arith.constant 0 : index
    %288 = vector.load %arg4[%c20_150, %c0_151] : memref<32x128xf32, #tpu.memory_space<vmem>>, vector<4x128xf32>
    tpu.vector_store %arg4[%c20_150, %c0_151], %287 {strides = array<i32>} : memref<32x128xf32, #tpu.memory_space<vmem>>, vector<4x128xf32>,
    %c24 = arith.constant 24 : index
    %c0_152 = arith.constant 0 : index
    %289 = vector.load %arg0[%c24, %c0_152] : memref<32x128xf32, #tpu.memory_space<vmem>>, vector<4x128xf32>
    %290 = arith.addf %287, %289 : vector<4x128xf32>
    %c2_i32_153 = arith.constant 2 : i32
    %291 = tpu.dynamic_rotate %290 by %c2_i32_153 dim 1 : vector<4x128xf32>, i32 -> vector<4x128xf32>
    %cst_154 = arith.constant 0.000000e+00 : f32
    %292 = vector.broadcast %cst_154 : f32 to vector<4x128xf32>
    %293 = arith.select %25, %291, %292 : vector<4x128xi1>, vector<4x128xf32>
    %cst_155 = arith.constant 0.000000e+00 : f32
    %294 = vector.broadcast %cst_155 : f32 to vector<4x128xf32>
    %295 = arith.select %34, %290, %294 : vector<4x128xi1>, vector<4x128xf32>
    %c126_i32_156 = arith.constant 126 : i32
    %296 = tpu.dynamic_rotate %290 by %c126_i32_156 dim 1 : vector<4x128xf32>, i32 -> vector<4x128xf32>
    %cst_157 = arith.constant 0.000000e+00 : f32
    %297 = vector.broadcast %cst_157 : f32 to vector<4x128xf32>
    %298 = arith.select %43, %296, %297 : vector<4x128xi1>, vector<4x128xf32>
    %299 = tpu.concatenate %293, %295, %298, %44 in 0 : vector<4x128xf32>, vector<4x128xf32>, vector<4x128xf32>, vector<1x128xf32> -> vector<13x128xf32>
    %c6 = arith.constant 6 : index
    %c0_158 = arith.constant 0 : index
    %c0_159 = arith.constant 0 : index
    %300 = vector.load %arg1[%c6, %c0_158, %c0_159] : memref<7x4x13xf32, #tpu.memory_space<vmem>>, vector<1x4x13xf32>
    %301 = vector.shape_cast %300 : vector<1x4x13xf32> to vector<4x13xf32>
    %cst_160 = arith.constant dense<0.000000e+00> : vector<4x128xf32>
    %302 = tpu.matmul %301, %299, %cst_160 {dimension_numbers = #tpu.dot_dimension_numbers<[1], [0], [0], [1], [0, 0, 1, 1], [], []>} : vector<4x13xf32>, vector<13x128xf32>, vector<4x128xf32> -> vector<4x128xf32>
    %cst_161 = arith.constant 0.000000e+00 : f32
    %303 = vector.broadcast %cst_161 : f32 to vector<4x128xf32>
    %304 = arith.maximumf %302, %303 : vector<4x128xf32>
    %cst_162 = arith.constant dense<0.000000e+00> : vector<4x1xf32>
    %305 = tpu.matmul %304, %49, %cst_162 {dimension_numbers = #tpu.dot_dimension_numbers<[1], [0], [0], [1], [0, 0, 1, 1], [], []>} : vector<4x128xf32>, vector<128x1xf32>, vector<4x1xf32> -> vector<4x1xf32>
    %306 = arith.mulf %304, %304 : vector<4x128xf32>
    %cst_163 = arith.constant dense<0.000000e+00> : vector<4x1xf32>
    %307 = tpu.matmul %306, %49, %cst_163 {dimension_numbers = #tpu.dot_dimension_numbers<[1], [0], [0], [1], [0, 0, 1, 1], [], []>} : vector<4x128xf32>, vector<128x1xf32>, vector<4x1xf32> -> vector<4x1xf32>
    %cst_164 = arith.constant 3.125000e-02 : f32
    %308 = vector.broadcast %cst_164 : f32 to vector<4x1xf32>
    %309 = arith.mulf %305, %308 : vector<4x1xf32>
    %cst_165 = arith.constant 3.125000e-02 : f32
    %310 = vector.broadcast %cst_165 : f32 to vector<4x1xf32>
    %311 = arith.mulf %307, %310 : vector<4x1xf32>
    %312 = arith.mulf %309, %309 : vector<4x1xf32>
    %313 = arith.subf %311, %312 : vector<4x1xf32>
    %cst_166 = arith.constant 9.99999974E-6 : f32
    %314 = vector.broadcast %cst_166 : f32 to vector<4x1xf32>
    %315 = arith.addf %313, %314 : vector<4x1xf32>
    %316 = math.rsqrt %315 : vector<4x1xf32>
    %c6_167 = arith.constant 6 : index
    %c0_168 = arith.constant 0 : index
    %c0_169 = arith.constant 0 : index
    %317 = vector.load %arg2[%c6_167, %c0_168, %c0_169] : memref<7x4x1xf32, #tpu.memory_space<vmem>>, vector<1x4x1xf32>
    %318 = vector.shape_cast %317 : vector<1x4x1xf32> to vector<4x1xf32>
    %319 = arith.mulf %316, %318 : vector<4x1xf32>
    %320 = vector.broadcast %309 : vector<4x1xf32> to vector<4x128xf32>
    %321 = arith.subf %304, %320 : vector<4x128xf32>
    %322 = vector.broadcast %319 : vector<4x1xf32> to vector<4x128xf32>
    %323 = arith.mulf %321, %322 : vector<4x128xf32>
    %c6_170 = arith.constant 6 : index
    %c0_171 = arith.constant 0 : index
    %c0_172 = arith.constant 0 : index
    %324 = vector.load %arg3[%c6_170, %c0_171, %c0_172] : memref<7x4x1xf32, #tpu.memory_space<vmem>>, vector<1x4x1xf32>
    %325 = vector.shape_cast %324 : vector<1x4x1xf32> to vector<4x1xf32>
    %326 = vector.broadcast %325 : vector<4x1xf32> to vector<4x128xf32>
    %327 = arith.addf %323, %326 : vector<4x128xf32>
    %c24_173 = arith.constant 24 : index
    %c0_174 = arith.constant 0 : index
    %328 = vector.load %arg4[%c24_173, %c0_174] : memref<32x128xf32, #tpu.memory_space<vmem>>, vector<4x128xf32>
    tpu.vector_store %arg4[%c24_173, %c0_174], %327 {strides = array<i32>} : memref<32x128xf32, #tpu.memory_space<vmem>>, vector<4x128xf32>,
    %c28 = arith.constant 28 : index
    %c0_175 = arith.constant 0 : index
    %329 = vector.load %arg0[%c28, %c0_175] : memref<32x128xf32, #tpu.memory_space<vmem>>, vector<4x128xf32>
    %c28_176 = arith.constant 28 : index
    %c0_177 = arith.constant 0 : index
    %330 = vector.load %arg4[%c28_176, %c0_177] : memref<32x128xf32, #tpu.memory_space<vmem>>, vector<4x128xf32>
    tpu.vector_store %arg4[%c28_176, %c0_177], %329 {strides = array<i32>} : memref<32x128xf32, #tpu.memory_space<vmem>>, vector<4x128xf32>,
    return
  }
}

</mosaic_0001>

<llo_original>
// kernel: res2conv1d.1
$region0: #{res2conv1d.1}
  #allocation0 [shape = 'u32[]', space=smem, size = 0x4, offset = 0x4, fixed_abs, tag = 'smem constant byte address 0x4 - core index']
  #allocation1 [shape = 'u32[72,128]{1,0:T(1,128)}', space=vmem, size = 0x9000, scoped, tag = 'internal scratch']
  %s0 = inlined_call_operand.vmem [shape: f32[32,128], index: 0, kind: input, shape index: {}]
  %s1 = inlined_call_operand.vmem [shape: f32[7,4,13], index: 1, kind: input, shape index: {}]
  %s2 = inlined_call_operand.vmem [shape: f32[7,4,1], index: 2, kind: input, shape index: {}]
  %s3 = inlined_call_operand.vmem [shape: f32[7,4,1], index: 3, kind: input, shape index: {}]
  %s4 = inlined_call_operand.vmem [shape: f32[32,128], index: 4, kind: output, shape index: {}]
  %s5 = sld [smem:[#allocation0]]
  $region26: #{res2conv1d.1} parent=0
    _
  %s7 = ssub.s32 1, %s5
  %s8 = scalar_select 0, %s7, %s5
  // Predicated region
  $region2: #{res2conv1d.1} parent=0 // pred_check
    _
  $region3: #{res2conv1d.1} parent=0 // pred_check_branch
    %10 = sbr.rel (0) target = $region5
  $region4: #{res2conv1d.1} parent=0 // pred_region
    _
  $region5: #{res2conv1d.1} parent=0 // pred_fallthru
    _
  // Predicated region
  $region6: #{res2conv1d.1} parent=0 // pred_check
    _
  $region7: #{res2conv1d.1} parent=0 // pred_check_branch
    %12 = sbr.rel (0) target = $region9
  $region8: #{res2conv1d.1} parent=0 // pred_region
    _
  $region9: #{res2conv1d.1} parent=0 // pred_fallthru
    _
  // Predicated region
  $region10: #{res2conv1d.1} parent=0 // pred_check
    _
  $region11: #{res2conv1d.1} parent=0 // pred_check_branch
    %14 = sbr.rel (0) target = $region13
  $region12: #{res2conv1d.1} parent=0 // pred_region
    _
  $region13: #{res2conv1d.1} parent=0 // pred_fallthru
    _
  // Predicated region
  $region14: #{res2conv1d.1} parent=0 // pred_check
    _
  $region15: #{res2conv1d.1} parent=0 // pred_check_branch
    %16 = sbr.rel (0) target = $region17
  $region16: #{res2conv1d.1} parent=0 // pred_region
    _
  $region17: #{res2conv1d.1} parent=0 // pred_fallthru
    _
  %v17 = vlaneseq
  %v18 = vand.u32 %v17, 127
  %vm19 = vcmp.lt.s32.totalorder %v18, 0
  %v20 = vsub.s32 0, %v18
  %v21 = vsel %vm19, %v20, %v18
  %v22 = vshrl.u32 %v21, 4
  %v23 = vand.u32 %v21, 15
  %v24 = vsub.s32 0, %v23
  %v25 = vsel %vm19, %v24, %v23
  %vm26 = vcmp.ne.s32.totalorder %v25, 0
  %vm27 = vcmp.lt.s32.totalorder %v25, 0
  %vm28 = vmand %vm27, %vm26
  %v29 = vadd.s32 %v25, 16
  %v30 = vsel %vm28, %v29, %v25
  %v31 = vadd.s32 %v30, 4294967294
  %vm32 = vcmp.ge.s32.totalorder %v31, 0
  %vm33 = vcmp.lt.s32.totalorder %v31, 16
  %vm34 = vmand %vm32, %vm33
  %vm35 = vcmp.ge.s32.totalorder %v30, 0
  %vm36 = vcmp.lt.s32.totalorder %v30, 16
  %vm37 = vmand %vm35, %vm36
  %v38 = vadd.s32 %v30, 2
  %vm39 = vcmp.ge.s32.totalorder %v38, 0
  %vm40 = vcmp.lt.s32.totalorder %v38, 16
  %vm41 = vmand %vm39, %vm40
  %v42 = vlaneseq
  %v43 = vshrl.u32 %v42, 7
  %v44 = vadd.s32 %v43, 8
  %v45 = vadd.s32 %v43, 16
  %v46 = vadd.s32 %v43, 24
  %v47 = vadd.s32 %v43, 32
  %v48 = vadd.s32 %v43, 40
  %v49 = vadd.s32 %v43, 48
  %v50 = vadd.s32 %v43, 56
  %v51 = vadd.s32 %v43, 64
  %v52 = vadd.s32 %v43, 72
  %v53 = vadd.s32 %v43, 80
  %v54 = vadd.s32 %v43, 88
  %v55 = vadd.s32 %v43, 96
  %v56 = vadd.s32 %v43, 104
  %v57 = vadd.s32 %v43, 112
  %v58 = vadd.s32 %v43, 120
  %vm59 = vcmp.lt.s32.totalorder %v43, 32
  %vm60 = vcmp.lt.s32.totalorder %v44, 32
  %vm61 = vcmp.lt.s32.totalorder %v45, 32
  %vm62 = vcmp.lt.s32.totalorder %v46, 32
  %vm63 = vcmp.lt.s32.totalorder %v47, 32
  %vm64 = vcmp.lt.s32.totalorder %v48, 32
  %vm65 = vcmp.lt.s32.totalorder %v49, 32
  %vm66 = vcmp.lt.s32.totalorder %v50, 32
  %vm67 = vcmp.lt.s32.totalorder %v51, 32
  %vm68 = vcmp.lt.s32.totalorder %v52, 32
  %vm69 = vcmp.lt.s32.totalorder %v53, 32
  %vm70 = vcmp.lt.s32.totalorder %v54, 32
  %vm71 = vcmp.lt.s32.totalorder %v55, 32
  %vm72 = vcmp.lt.s32.totalorder %v56, 32
  %vm73 = vcmp.lt.s32.totalorder %v57, 32
  %vm74 = vcmp.lt.s32.totalorder %v58, 32
  %v75 = vsel %vm59, 1, 0
  %v76 = vsel %vm60, 1, 0
  %v77 = vsel %vm61, 1, 0
  %v78 = vsel %vm62, 1, 0
  %v79 = vsel %vm63, 1, 0
  %v80 = vsel %vm64, 1, 0
  %v81 = vsel %vm65, 1, 0
  %v82 = vsel %vm66, 1, 0
  %v83 = vsel %vm67, 1, 0
  %v84 = vsel %vm68, 1, 0
  %v85 = vsel %vm69, 1, 0
  %v86 = vsel %vm70, 1, 0
  %v87 = vsel %vm71, 1, 0
  %v88 = vsel %vm72, 1, 0
  %v89 = vsel %vm73, 1, 0
  %v90 = vsel %vm74, 1, 0
  %v91 = vcvt.s32.f32 %v75
  %v92 = vcvt.s32.f32 %v76
  %v93 = vcvt.s32.f32 %v77
  %v94 = vcvt.s32.f32 %v78
  %v95 = vcvt.s32.f32 %v79
  %v96 = vcvt.s32.f32 %v80
  %v97 = vcvt.s32.f32 %v81
  %v98 = vcvt.s32.f32 %v82
  %v99 = vcvt.s32.f32 %v83
  %v100 = vcvt.s32.f32 %v84
  %v101 = vcvt.s32.f32 %v85
  %v102 = vcvt.s32.f32 %v86
  %v103 = vcvt.s32.f32 %v87
  %v104 = vcvt.s32.f32 %v88
  %v105 = vcvt.s32.f32 %v89
  %v106 = vcvt.s32.f32 %v90
  %v107 = vld [vmem:[%s0] sm:$0xf]
  %108 = vrot.lane.b32.xlu0 %v107, 2
  %v109 = vpop.permute.xlu0 %108
  %v110 = vsel %vm34, %v109, 0.0
  %v111 = vsel %vm37, %v107, 0.0
  %112 = vrot.lane.b32.xlu0 %v107, 126
  %v113 = vpop.permute.xlu0 %112
  %v114 = vsel %vm41, %v113, 0.0
  %v116 = vrot.slane %v111, 4
  %vm118 = vcmask 1043456
  %v119 = vsel %vm118, %v110, %v116
  %v120 = vsel %vm118, %v114, 1.0
  %v121 = vld [vmem:[%s1] sm:$0xf]
  %vm122 = vcmask 105472
  %v124 = vsel %vm122, %v121, 0
  %vm126 = vcmask 1044480
  %v128 = vsel %vm126, %v120, 0
  %130 = vmatpush.msra.mxu0 0.0
  %131 = vmatpush.msra.mxu0 0.0
  %132 = vmatpush.msra.mxu0 0.0
  %133 = vmatpush.msra.mxu0 0.0
  %134 = vmatpush.msra.mxu0 0.0
  %135 = vmatpush.msra.mxu0 0.0
  %136 = vmatpush.msra.mxu0 0.0
  %137 = vmatpush.msra.mxu0 0.0
  %138 = vmatpush.msra.mxu0 0.0
  %139 = vmatpush.msra.mxu0 0.0
  %140 = vmatpush.msra.mxu0 0.0
  %141 = vmatpush.msra.mxu0 0.0
  %142 = vmatpush.msra.mxu0 0.0
  %143 = vmatpush.msra.mxu0 0.0
  %144 = vmatpush.msra.mxu0 %v128
  %145 = vmatpush.msra.mxu0 %v119
  %146 = vmatmul.f32.gmra.mxu0 %v124
  %v147 = vpop.f32.mrf.mxu0
  %v148 = vadd.f32 0.0, %v147
  %149 = vdwg.mxu0
  %v150 = vmax.f32 %v148, 0.0
  %151 = vmatpush.msra.mxu0 %v106
  %152 = vmatpush.msra.mxu0 %v105
  %153 = vmatpush.msra.mxu0 %v104
  %154 = vmatpush.msra.mxu0 %v103
  %155 = vmatpush.msra.mxu0 %v102
  %156 = vmatpush.msra.mxu0 %v101
  %157 = vmatpush.msra.mxu0 %v100
  %158 = vmatpush.msra.mxu0 %v99
  %159 = vmatpush.msra.mxu0 %v98
  %160 = vmatpush.msra.mxu0 %v97
  %161 = vmatpush.msra.mxu0 %v96
  %162 = vmatpush.msra.mxu0 %v95
  %163 = vmatpush.msra.mxu0 %v94
  %164 = vmatpush.msra.mxu0 %v93
  %165 = vmatpush.msra.mxu0 %v92
  %166 = vmatpush.msra.mxu0 %v91
  %167 = vmatmul.f32.gmra.mxu0 %v150
  %v168 = vpop.f32.mrf.mxu0
  %v169 = vadd.f32 0.0, %v168
  %170 = vdwg.mxu0
  %v171 = vmul.f32 %v150, %v150
  %172 = vmatpush.msra.mxu0 %v106
  %173 = vmatpush.msra.mxu0 %v105
  %174 = vmatpush.msra.mxu0 %v104
  %175 = vmatpush.msra.mxu0 %v103
  %176 = vmatpush.msra.mxu0 %v102
  %177 = vmatpush.msra.mxu0 %v101
  %178 = vmatpush.msra.mxu0 %v100
  %179 = vmatpush.msra.mxu0 %v99
  %180 = vmatpush.msra.mxu0 %v98
  %181 = vmatpush.msra.mxu0 %v97
  %182 = vmatpush.msra.mxu0 %v96
  %183 = vmatpush.msra.mxu0 %v95
  %184 = vmatpush.msra.mxu0 %v94
  %185 = vmatpush.msra.mxu0 %v93
  %186 = vmatpush.msra.mxu0 %v92
  %187 = vmatpush.msra.mxu0 %v91
  %188 = vmatmul.f32.gmra.mxu0 %v171
  %v189 = vpop.f32.mrf.mxu0
  %v190 = vadd.f32 0.0, %v189
  %191 = vdwg.mxu0
  %v192 = vmul.f32 %v169, 0.03125
  %v193 = vmul.f32 %v190, 0.03125
  %v194 = vmul.f32 %v192, %v192
  %v195 = vsub.f32 %v193, %v194
  %v196 = vadd.f32 %v195, 1e-05
  %v197 = vrsqrt.pop %v196
  %v198 = vmul.f32 %v197, %v196
  %v199 = vmul.f32 %v198, %v197
  %v200 = vmul.f32 0.5, %v199
  %v201 = vsub.f32 1.5, %v200
  %v202 = vmul.f32 %v197, %v201
  %vm203 = vweird.f32 %v196
  %vm204 = vweird.f32 %v197
  %vm205 = vmor %vm203, %vm204
  %v206 = vsel %vm205, %v197, %v202
  %v207 = vld [vmem:[%s2] sm:$0xf]
  %v208 = vmul.f32 %v206, %v207
  %210 = vset.pattern.permute.xlu0 0
  %211 = vperm.xlu0 %210, %v192
  %v212 = vpop.permute.xlu0 %211
  %v214 = vsub.f32 %v150, %v212
  %216 = vset.pattern.permute.xlu0 0
  %217 = vperm.xlu0 %216, %v208
  %v218 = vpop.permute.xlu0 %217
  %v220 = vmul.f32 %v214, %v218
  %v221 = vld [vmem:[%s3] sm:$0xf]
  %223 = vset.pattern.permute.xlu0 0
  %224 = vperm.xlu0 %223, %v221
  %v225 = vpop.permute.xlu0 %224
  %v227 = vadd.f32 %v220, %v225
  %228 = vst [vmem:[%s4] sm:$0xf] %v227
  %v229 = vld [vmem:[%s0 + $0x4] sm:$0xf]
  %v230 = vadd.f32 %v227, %v229
  %231 = vrot.lane.b32.xlu0 %v230, 2
  %v232 = vpop.permute.xlu0 %231
  %v233 = vsel %vm34, %v232, 0.0
  %v234 = vsel %vm37, %v230, 0.0
  %235 = vrot.lane.b32.xlu0 %v230, 126
  %v236 = vpop.permute.xlu0 %235
  %v237 = vsel %vm41, %v236, 0.0
  %v239 = vrot.slane %v234, 4
  %v241 = vsel %vm118, %v233, %v239
  %v242 = vsel %vm118, %v237, 1.0
  %s243 = scalar_lea.vmem %s1, 4
  %v244 = vld [vmem:[%s243] sm:$0xf]
  %v246 = vsel %vm122, %v244, 0
  %v249 = vsel %vm126, %v242, 0
  %251 = vmatpush.msra.mxu0 0.0
  %252 = vmatpush.msra.mxu0 0.0
  %253 = vmatpush.msra.mxu0 0.0
  %254 = vmatpush.msra.mxu0 0.0
  %255 = vmatpush.msra.mxu0 0.0
  %256 = vmatpush.msra.mxu0 0.0
  %257 = vmatpush.msra.mxu0 0.0
  %258 = vmatpush.msra.mxu0 0.0
  %259 = vmatpush.msra.mxu0 0.0
  %260 = vmatpush.msra.mxu0 0.0
  %261 = vmatpush.msra.mxu0 0.0
  %262 = vmatpush.msra.mxu0 0.0
  %263 = vmatpush.msra.mxu0 0.0
  %264 = vmatpush.msra.mxu0 0.0
  %265 = vmatpush.msra.mxu0 %v249
  %266 = vmatpush.msra.mxu0 %v241
  %267 = vmatmul.f32.gmra.mxu0 %v246
  %v268 = vpop.f32.mrf.mxu0
  %v269 = vadd.f32 0.0, %v268
  %270 = vdwg.mxu0
  %v271 = vmax.f32 %v269, 0.0
  %272 = vmatpush.msra.mxu0 %v106
  %273 = vmatpush.msra.mxu0 %v105
  %274 = vmatpush.msra.mxu0 %v104
  %275 = vmatpush.msra.mxu0 %v103
  %276 = vmatpush.msra.mxu0 %v102
  %277 = vmatpush.msra.mxu0 %v101
  %278 = vmatpush.msra.mxu0 %v100
  %279 = vmatpush.msra.mxu0 %v99
  %280 = vmatpush.msra.mxu0 %v98
  %281 = vmatpush.msra.mxu0 %v97
  %282 = vmatpush.msra.mxu0 %v96
  %283 = vmatpush.msra.mxu0 %v95
  %284 = vmatpush.msra.mxu0 %v94
  %285 = vmatpush.msra.mxu0 %v93
  %286 = vmatpush.msra.mxu0 %v92
  %287 = vmatpush.msra.mxu0 %v91
  %288 = vmatmul.f32.gmra.mxu0 %v271
  %v289 = vpop.f32.mrf.mxu0
  %v290 = vadd.f32 0.0, %v289
  %291 = vdwg.mxu0
  %v292 = vmul.f32 %v271, %v271
  %293 = vmatpush.msra.mxu0 %v106
  %294 = vmatpush.msra.mxu0 %v105
  %295 = vmatpush.msra.mxu0 %v104
  %296 = vmatpush.msra.mxu0 %v103
  %297 = vmatpush.msra.mxu0 %v102
  %298 = vmatpush.msra.mxu0 %v101
  %299 = vmatpush.msra.mxu0 %v100
  %300 = vmatpush.msra.mxu0 %v99
  %301 = vmatpush.msra.mxu0 %v98
  %302 = vmatpush.msra.mxu0 %v97
  %303 = vmatpush.msra.mxu0 %v96
  %304 = vmatpush.msra.mxu0 %v95
  %305 = vmatpush.msra.mxu0 %v94
  %306 = vmatpush.msra.mxu0 %v93
  %307 = vmatpush.msra.mxu0 %v92
  %308 = vmatpush.msra.mxu0 %v91
  %309 = vmatmul.f32.gmra.mxu0 %v292
  %v310 = vpop.f32.mrf.mxu0
  %v311 = vadd.f32 0.0, %v310
  %312 = vdwg.mxu0
  %v313 = vmul.f32 %v290, 0.03125
  %v314 = vmul.f32 %v311, 0.03125
  %v315 = vmul.f32 %v313, %v313
  %v316 = vsub.f32 %v314, %v315
  %v317 = vadd.f32 %v316, 1e-05
  %v318 = vrsqrt.pop %v317
  %v319 = vmul.f32 %v318, %v317
  %v320 = vmul.f32 %v319, %v318
  %v321 = vmul.f32 0.5, %v320
  %v322 = vsub.f32 1.5, %v321
  %v323 = vmul.f32 %v318, %v322
  %vm324 = vweird.f32 %v317
  %vm325 = vweird.f32 %v318
  %vm326 = vmor %vm324, %vm325
  %v327 = vsel %vm326, %v318, %v323
  %s328 = scalar_lea.vmem %s2, 4
  %v329 = vld [vmem:[%s328] sm:$0xf]
  %v330 = vmul.f32 %v327, %v329
  %332 = vset.pattern.permute.xlu0 0
  %333 = vperm.xlu0 %332, %v313
  %v334 = vpop.permute.xlu0 %333
  %v336 = vsub.f32 %v271, %v334
  %338 = vset.pattern.permute.xlu0 0
  %339 = vperm.xlu0 %338, %v330
  %v340 = vpop.permute.xlu0 %339
  %v342 = vmul.f32 %v336, %v340
  %s343 = scalar_lea.vmem %s3, 4
  %v344 = vld [vmem:[%s343] sm:$0xf]
  %346 = vset.pattern.permute.xlu0 0
  %347 = vperm.xlu0 %346, %v344
  %v348 = vpop.permute.xlu0 %347
  %v350 = vadd.f32 %v342, %v348
  %351 = vst [vmem:[%s4 + $0x4] sm:$0xf] %v350
  %v352 = vld [vmem:[%s0 + $0x8] sm:$0xf]
  %v353 = vadd.f32 %v350, %v352
  %354 = vrot.lane.b32.xlu0 %v353, 2
  %v355 = vpop.permute.xlu0 %354
  %v356 = vsel %vm34, %v355, 0.0
  %v357 = vsel %vm37, %v353, 0.0
  %358 = vrot.lane.b32.xlu0 %v353, 126
  %v359 = vpop.permute.xlu0 %358
  %v360 = vsel %vm41, %v359, 0.0
  %v362 = vrot.slane %v357, 4
  %v364 = vsel %vm118, %v356, %v362
  %v365 = vsel %vm118, %v360, 1.0
  %s366 = scalar_lea.vmem %s1, 8
  %v367 = vld [vmem:[%s366] sm:$0xf]
  %v369 = vsel %vm122, %v367, 0
  %v372 = vsel %vm126, %v365, 0
  %374 = vmatpush.msra.mxu0 0.0
  %375 = vmatpush.msra.mxu0 0.0
  %376 = vmatpush.msra.mxu0 0.0
  %377 = vmatpush.msra.mxu0 0.0
  %378 = vmatpush.msra.mxu0 0.0
  %379 = vmatpush.msra.mxu0 0.0
  %380 = vmatpush.msra.mxu0 0.0
  %381 = vmatpush.msra.mxu0 0.0
  %382 = vmatpush.msra.mxu0 0.0
  %383 = vmatpush.msra.mxu0 0.0
  %384 = vmatpush.msra.mxu0 0.0
  %385 = vmatpush.msra.mxu0 0.0
  %386 = vmatpush.msra.mxu0 0.0
  %387 = vmatpush.msra.mxu0 0.0
  %388 = vmatpush.msra.mxu0 %v372
  %389 = vmatpush.msra.mxu0 %v364
  %390 = vmatmul.f32.gmra.mxu0 %v369
  %v391 = vpop.f32.mrf.mxu0
  %v392 = vadd.f32 0.0, %v391
  %393 = vdwg.mxu0
  %v394 = vmax.f32 %v392, 0.0
  %395 = vmatpush.msra.mxu0 %v106
  %396 = vmatpush.msra.mxu0 %v105
  %397 = vmatpush.msra.mxu0 %v104
  %398 = vmatpush.msra.mxu0 %v103
  %399 = vmatpush.msra.mxu0 %v102
  %400 = vmatpush.msra.mxu0 %v101
  %401 = vmatpush.msra.mxu0 %v100
  %402 = vmatpush.msra.mxu0 %v99
  %403 = vmatpush.msra.mxu0 %v98
  %404 = vmatpush.msra.mxu0 %v97
  %405 = vmatpush.msra.mxu0 %v96
  %406 = vmatpush.msra.mxu0 %v95
  %407 = vmatpush.msra.mxu0 %v94
  %408 = vmatpush.msra.mxu0 %v93
  %409 = vmatpush.msra.mxu0 %v92
  %410 = vmatpush.msra.mxu0 %v91
  %411 = vmatmul.f32.gmra.mxu0 %v394
  %v412 = vpop.f32.mrf.mxu0
  %v413 = vadd.f32 0.0, %v412
  %414 = vdwg.mxu0
  %v415 = vmul.f32 %v394, %v394
  %416 = vmatpush.msra.mxu0 %v106
  %417 = vmatpush.msra.mxu0 %v105
  %418 = vmatpush.msra.mxu0 %v104
  %419 = vmatpush.msra.mxu0 %v103
  %420 = vmatpush.msra.mxu0 %v102
  %421 = vmatpush.msra.mxu0 %v101
  %422 = vmatpush.msra.mxu0 %v100
  %423 = vmatpush.msra.mxu0 %v99
  %424 = vmatpush.msra.mxu0 %v98
  %425 = vmatpush.msra.mxu0 %v97
  %426 = vmatpush.msra.mxu0 %v96
  %427 = vmatpush.msra.mxu0 %v95
  %428 = vmatpush.msra.mxu0 %v94
  %429 = vmatpush.msra.mxu0 %v93
  %430 = vmatpush.msra.mxu0 %v92
  %431 = vmatpush.msra.mxu0 %v91
  %432 = vmatmul.f32.gmra.mxu0 %v415
  %v433 = vpop.f32.mrf.mxu0
  %v434 = vadd.f32 0.0, %v433
  %435 = vdwg.mxu0
  %v436 = vmul.f32 %v413, 0.03125
  %v437 = vmul.f32 %v434, 0.03125
  %v438 = vmul.f32 %v436, %v436
  %v439 = vsub.f32 %v437, %v438
  %v440 = vadd.f32 %v439, 1e-05
  %v441 = vrsqrt.pop %v440
  %v442 = vmul.f32 %v441, %v440
  %v443 = vmul.f32 %v442, %v441
  %v444 = vmul.f32 0.5, %v443
  %v445 = vsub.f32 1.5, %v444
  %v446 = vmul.f32 %v441, %v445
  %vm447 = vweird.f32 %v440
  %vm448 = vweird.f32 %v441
  %vm449 = vmor %vm447, %vm448
  %v450 = vsel %vm449, %v441, %v446
  %s451 = scalar_lea.vmem %s2, 8
  %v452 = vld [vmem:[%s451] sm:$0xf]
  %v453 = vmul.f32 %v450, %v452
  %455 = vset.pattern.permute.xlu0 0
  %456 = vperm.xlu0 %455, %v436
  %v457 = vpop.permute.xlu0 %456
  %v459 = vsub.f32 %v394, %v457
  %461 = vset.pattern.permute.xlu0 0
  %462 = vperm.xlu0 %461, %v453
  %v463 = vpop.permute.xlu0 %462
  %v465 = vmul.f32 %v459, %v463
  %s466 = scalar_lea.vmem %s3, 8
  %v467 = vld [vmem:[%s466] sm:$0xf]
  %469 = vset.pattern.permute.xlu0 0
  %470 = vperm.xlu0 %469, %v467
  %v471 = vpop.permute.xlu0 %470
  %v473 = vadd.f32 %v465, %v471
  %474 = vst [vmem:[%s4 + $0x8] sm:$0xf] %v473
  %v475 = vld [vmem:[%s0 + $0xc] sm:$0xf]
  %v476 = vadd.f32 %v473, %v475
  %477 = vrot.lane.b32.xlu0 %v476, 2
  %v478 = vpop.permute.xlu0 %477
  %v479 = vsel %vm34, %v478, 0.0
  %v480 = vsel %vm37, %v476, 0.0
  %481 = vrot.lane.b32.xlu0 %v476, 126
  %v482 = vpop.permute.xlu0 %481
  %v483 = vsel %vm41, %v482, 0.0
  %v485 = vrot.slane %v480, 4
  %v487 = vsel %vm118, %v479, %v485
  %v488 = vsel %vm118, %v483, 1.0
  %s489 = scalar_lea.vmem %s1, 12
  %v490 = vld [vmem:[%s489] sm:$0xf]
  %v492 = vsel %vm122, %v490, 0
  %v495 = vsel %vm126, %v488, 0
  %497 = vmatpush.msra.mxu0 0.0
  %498 = vmatpush.msra.mxu0 0.0
  %499 = vmatpush.msra.mxu0 0.0
  %500 = vmatpush.msra.mxu0 0.0
  %501 = vmatpush.msra.mxu0 0.0
  %502 = vmatpush.msra.mxu0 0.0
  %503 = vmatpush.msra.mxu0 0.0
  %504 = vmatpush.msra.mxu0 0.0
  %505 = vmatpush.msra.mxu0 0.0
  %506 = vmatpush.msra.mxu0 0.0
  %507 = vmatpush.msra.mxu0 0.0
  %508 = vmatpush.msra.mxu0 0.0
  %509 = vmatpush.msra.mxu0 0.0
  %510 = vmatpush.msra.mxu0 0.0
  %511 = vmatpush.msra.mxu0 %v495
  %512 = vmatpush.msra.mxu0 %v487
  %513 = vmatmul.f32.gmra.mxu0 %v492
  %v514 = vpop.f32.mrf.mxu0
  %v515 = vadd.f32 0.0, %v514
  %516 = vdwg.mxu0
  %v517 = vmax.f32 %v515, 0.0
  %518 = vmatpush.msra.mxu0 %v106
  %519 = vmatpush.msra.mxu0 %v105
  %520 = vmatpush.msra.mxu0 %v104
  %521 = vmatpush.msra.mxu0 %v103
  %522 = vmatpush.msra.mxu0 %v102
  %523 = vmatpush.msra.mxu0 %v101
  %524 = vmatpush.msra.mxu0 %v100
  %525 = vmatpush.msra.mxu0 %v99
  %526 = vmatpush.msra.mxu0 %v98
  %527 = vmatpush.msra.mxu0 %v97
  %528 = vmatpush.msra.mxu0 %v96
  %529 = vmatpush.msra.mxu0 %v95
  %530 = vmatpush.msra.mxu0 %v94
  %531 = vmatpush.msra.mxu0 %v93
  %532 = vmatpush.msra.mxu0 %v92
  %533 = vmatpush.msra.mxu0 %v91
  %534 = vmatmul.f32.gmra.mxu0 %v517
  %v535 = vpop.f32.mrf.mxu0
  %v536 = vadd.f32 0.0, %v535
  %537 = vdwg.mxu0
  %v538 = vmul.f32 %v517, %v517
  %539 = vmatpush.msra.mxu0 %v106
  %540 = vmatpush.msra.mxu0 %v105
  %541 = vmatpush.msra.mxu0 %v104
  %542 = vmatpush.msra.mxu0 %v103
  %543 = vmatpush.msra.mxu0 %v102
  %544 = vmatpush.msra.mxu0 %v101
  %545 = vmatpush.msra.mxu0 %v100
  %546 = vmatpush.msra.mxu0 %v99
  %547 = vmatpush.msra.mxu0 %v98
  %548 = vmatpush.msra.mxu0 %v97
  %549 = vmatpush.msra.mxu0 %v96
  %550 = vmatpush.msra.mxu0 %v95
  %551 = vmatpush.msra.mxu0 %v94
  %552 = vmatpush.msra.mxu0 %v93
  %553 = vmatpush.msra.mxu0 %v92
  %554 = vmatpush.msra.mxu0 %v91
  %555 = vmatmul.f32.gmra.mxu0 %v538
  %v556 = vpop.f32.mrf.mxu0
  %v557 = vadd.f32 0.0, %v556
  %558 = vdwg.mxu0
  %v559 = vmul.f32 %v536, 0.03125
  %v560 = vmul.f32 %v557, 0.03125
  %v561 = vmul.f32 %v559, %v559
  %v562 = vsub.f32 %v560, %v561
  %v563 = vadd.f32 %v562, 1e-05
  %v564 = vrsqrt.pop %v563
  %v565 = vmul.f32 %v564, %v563
  %v566 = vmul.f32 %v565, %v564
  %v567 = vmul.f32 0.5, %v566
  %v568 = vsub.f32 1.5, %v567
  %v569 = vmul.f32 %v564, %v568
  %vm570 = vweird.f32 %v563
  %vm571 = vweird.f32 %v564
  %vm572 = vmor %vm570, %vm571
  %v573 = vsel %vm572, %v564, %v569
  %s574 = scalar_lea.vmem %s2, 12
  %v575 = vld [vmem:[%s574] sm:$0xf]
  %v576 = vmul.f32 %v573, %v575
  %578 = vset.pattern.permute.xlu0 0
  %579 = vperm.xlu0 %578, %v559
  %v580 = vpop.permute.xlu0 %579
  %v582 = vsub.f32 %v517, %v580
  %584 = vset.pattern.permute.xlu0 0
  %585 = vperm.xlu0 %584, %v576
  %v586 = vpop.permute.xlu0 %585
  %v588 = vmul.f32 %v582, %v586
  %s589 = scalar_lea.vmem %s3, 12
  %v590 = vld [vmem:[%s589] sm:$0xf]
  %592 = vset.pattern.permute.xlu0 0
  %593 = vperm.xlu0 %592, %v590
  %v594 = vpop.permute.xlu0 %593
  %v596 = vadd.f32 %v588, %v594
  %597 = vst [vmem:[%s4 + $0xc] sm:$0xf] %v596
  %v598 = vld [vmem:[%s0 + $0x10] sm:$0xf]
  %v599 = vadd.f32 %v596, %v598
  %600 = vrot.lane.b32.xlu0 %v599, 2
  %v601 = vpop.permute.xlu0 %600
  %v602 = vsel %vm34, %v601, 0.0
  %v603 = vsel %vm37, %v599, 0.0
  %604 = vrot.lane.b32.xlu0 %v599, 126
  %v605 = vpop.permute.xlu0 %604
  %v606 = vsel %vm41, %v605, 0.0
  %v608 = vrot.slane %v603, 4
  %v610 = vsel %vm118, %v602, %v608
  %v611 = vsel %vm118, %v606, 1.0
  %s612 = scalar_lea.vmem %s1, 16
  %v613 = vld [vmem:[%s612] sm:$0xf]
  %v615 = vsel %vm122, %v613, 0
  %v618 = vsel %vm126, %v611, 0
  %620 = vmatpush.msra.mxu0 0.0
  %621 = vmatpush.msra.mxu0 0.0
  %622 = vmatpush.msra.mxu0 0.0
  %623 = vmatpush.msra.mxu0 0.0
  %624 = vmatpush.msra.mxu0 0.0
  %625 = vmatpush.msra.mxu0 0.0
  %626 = vmatpush.msra.mxu0 0.0
  %627 = vmatpush.msra.mxu0 0.0
  %628 = vmatpush.msra.mxu0 0.0
  %629 = vmatpush.msra.mxu0 0.0
  %630 = vmatpush.msra.mxu0 0.0
  %631 = vmatpush.msra.mxu0 0.0
  %632 = vmatpush.msra.mxu0 0.0
  %633 = vmatpush.msra.mxu0 0.0
  %634 = vmatpush.msra.mxu0 %v618
  %635 = vmatpush.msra.mxu0 %v610
  %636 = vmatmul.f32.gmra.mxu0 %v615
  %v637 = vpop.f32.mrf.mxu0
  %v638 = vadd.f32 0.0, %v637
  %639 = vdwg.mxu0
  %v640 = vmax.f32 %v638, 0.0
  %641 = vmatpush.msra.mxu0 %v106
  %642 = vmatpush.msra.mxu0 %v105
  %643 = vmatpush.msra.mxu0 %v104
  %644 = vmatpush.msra.mxu0 %v103
  %645 = vmatpush.msra.mxu0 %v102
  %646 = vmatpush.msra.mxu0 %v101
  %647 = vmatpush.msra.mxu0 %v100
  %648 = vmatpush.msra.mxu0 %v99
  %649 = vmatpush.msra.mxu0 %v98
  %650 = vmatpush.msra.mxu0 %v97
  %651 = vmatpush.msra.mxu0 %v96
  %652 = vmatpush.msra.mxu0 %v95
  %653 = vmatpush.msra.mxu0 %v94
  %654 = vmatpush.msra.mxu0 %v93
  %655 = vmatpush.msra.mxu0 %v92
  %656 = vmatpush.msra.mxu0 %v91
  %657 = vmatmul.f32.gmra.mxu0 %v640
  %v658 = vpop.f32.mrf.mxu0
  %v659 = vadd.f32 0.0, %v658
  %660 = vdwg.mxu0
  %v661 = vmul.f32 %v640, %v640
  %662 = vmatpush.msra.mxu0 %v106
  %663 = vmatpush.msra.mxu0 %v105
  %664 = vmatpush.msra.mxu0 %v104
  %665 = vmatpush.msra.mxu0 %v103
  %666 = vmatpush.msra.mxu0 %v102
  %667 = vmatpush.msra.mxu0 %v101
  %668 = vmatpush.msra.mxu0 %v100
  %669 = vmatpush.msra.mxu0 %v99
  %670 = vmatpush.msra.mxu0 %v98
  %671 = vmatpush.msra.mxu0 %v97
  %672 = vmatpush.msra.mxu0 %v96
  %673 = vmatpush.msra.mxu0 %v95
  %674 = vmatpush.msra.mxu0 %v94
  %675 = vmatpush.msra.mxu0 %v93
  %676 = vmatpush.msra.mxu0 %v92
  %677 = vmatpush.msra.mxu0 %v91
  %678 = vmatmul.f32.gmra.mxu0 %v661
  %v679 = vpop.f32.mrf.mxu0
  %v680 = vadd.f32 0.0, %v679
  %681 = vdwg.mxu0
  %v682 = vmul.f32 %v659, 0.03125
  %v683 = vmul.f32 %v680, 0.03125
  %v684 = vmul.f32 %v682, %v682
  %v685 = vsub.f32 %v683, %v684
  %v686 = vadd.f32 %v685, 1e-05
  %v687 = vrsqrt.pop %v686
  %v688 = vmul.f32 %v687, %v686
  %v689 = vmul.f32 %v688, %v687
  %v690 = vmul.f32 0.5, %v689
  %v691 = vsub.f32 1.5, %v690
  %v692 = vmul.f32 %v687, %v691
  %vm693 = vweird.f32 %v686
  %vm694 = vweird.f32 %v687
  %vm695 = vmor %vm693, %vm694
  %v696 = vsel %vm695, %v687, %v692
  %s697 = scalar_lea.vmem %s2, 16
  %v698 = vld [vmem:[%s697] sm:$0xf]
  %v699 = vmul.f32 %v696, %v698
  %701 = vset.pattern.permute.xlu0 0
  %702 = vperm.xlu0 %701, %v682
  %v703 = vpop.permute.xlu0 %702
  %v705 = vsub.f32 %v640, %v703
  %707 = vset.pattern.permute.xlu0 0
  %708 = vperm.xlu0 %707, %v699
  %v709 = vpop.permute.xlu0 %708
  %v711 = vmul.f32 %v705, %v709
  %s712 = scalar_lea.vmem %s3, 16
  %v713 = vld [vmem:[%s712] sm:$0xf]
  %715 = vset.pattern.permute.xlu0 0
  %716 = vperm.xlu0 %715, %v713
  %v717 = vpop.permute.xlu0 %716
  %v719 = vadd.f32 %v711, %v717
  %720 = vst [vmem:[%s4 + $0x10] sm:$0xf] %v719
  %v721 = vld [vmem:[%s0 + $0x14] sm:$0xf]
  %v722 = vadd.f32 %v719, %v721
  %723 = vrot.lane.b32.xlu0 %v722, 2
  %v724 = vpop.permute.xlu0 %723
  %v725 = vsel %vm34, %v724, 0.0
  %v726 = vsel %vm37, %v722, 0.0
  %727 = vrot.lane.b32.xlu0 %v722, 126
  %v728 = vpop.permute.xlu0 %727
  %v729 = vsel %vm41, %v728, 0.0
  %v731 = vrot.slane %v726, 4
  %v733 = vsel %vm118, %v725, %v731
  %v734 = vsel %vm118, %v729, 1.0
  %s735 = scalar_lea.vmem %s1, 20
  %v736 = vld [vmem:[%s735] sm:$0xf]
  %v738 = vsel %vm122, %v736, 0
  %v741 = vsel %vm126, %v734, 0
  %743 = vmatpush.msra.mxu0 0.0
  %744 = vmatpush.msra.mxu0 0.0
  %745 = vmatpush.msra.mxu0 0.0
  %746 = vmatpush.msra.mxu0 0.0
  %747 = vmatpush.msra.mxu0 0.0
  %748 = vmatpush.msra.mxu0 0.0
  %749 = vmatpush.msra.mxu0 0.0
  %750 = vmatpush.msra.mxu0 0.0
  %751 = vmatpush.msra.mxu0 0.0
  %752 = vmatpush.msra.mxu0 0.0
  %753 = vmatpush.msra.mxu0 0.0
  %754 = vmatpush.msra.mxu0 0.0
  %755 = vmatpush.msra.mxu0 0.0
  %756 = vmatpush.msra.mxu0 0.0
  %757 = vmatpush.msra.mxu0 %v741
  %758 = vmatpush.msra.mxu0 %v733
  %759 = vmatmul.f32.gmra.mxu0 %v738
  %v760 = vpop.f32.mrf.mxu0
  %v761 = vadd.f32 0.0, %v760
  %762 = vdwg.mxu0
  %v763 = vmax.f32 %v761, 0.0
  %764 = vmatpush.msra.mxu0 %v106
  %765 = vmatpush.msra.mxu0 %v105
  %766 = vmatpush.msra.mxu0 %v104
  %767 = vmatpush.msra.mxu0 %v103
  %768 = vmatpush.msra.mxu0 %v102
  %769 = vmatpush.msra.mxu0 %v101
  %770 = vmatpush.msra.mxu0 %v100
  %771 = vmatpush.msra.mxu0 %v99
  %772 = vmatpush.msra.mxu0 %v98
  %773 = vmatpush.msra.mxu0 %v97
  %774 = vmatpush.msra.mxu0 %v96
  %775 = vmatpush.msra.mxu0 %v95
  %776 = vmatpush.msra.mxu0 %v94
  %777 = vmatpush.msra.mxu0 %v93
  %778 = vmatpush.msra.mxu0 %v92
  %779 = vmatpush.msra.mxu0 %v91
  %780 = vmatmul.f32.gmra.mxu0 %v763
  %v781 = vpop.f32.mrf.mxu0
  %v782 = vadd.f32 0.0, %v781
  %783 = vdwg.mxu0
  %v784 = vmul.f32 %v763, %v763
  %785 = vmatpush.msra.mxu0 %v106
  %786 = vmatpush.msra.mxu0 %v105
  %787 = vmatpush.msra.mxu0 %v104
  %788 = vmatpush.msra.mxu0 %v103
  %789 = vmatpush.msra.mxu0 %v102
  %790 = vmatpush.msra.mxu0 %v101
  %791 = vmatpush.msra.mxu0 %v100
  %792 = vmatpush.msra.mxu0 %v99
  %793 = vmatpush.msra.mxu0 %v98
  %794 = vmatpush.msra.mxu0 %v97
  %795 = vmatpush.msra.mxu0 %v96
  %796 = vmatpush.msra.mxu0 %v95
  %797 = vmatpush.msra.mxu0 %v94
  %798 = vmatpush.msra.mxu0 %v93
  %799 = vmatpush.msra.mxu0 %v92
  %800 = vmatpush.msra.mxu0 %v91
  %801 = vmatmul.f32.gmra.mxu0 %v784
  %v802 = vpop.f32.mrf.mxu0
  %v803 = vadd.f32 0.0, %v802
  %804 = vdwg.mxu0
  %v805 = vmul.f32 %v782, 0.03125
  %v806 = vmul.f32 %v803, 0.03125
  %v807 = vmul.f32 %v805, %v805
  %v808 = vsub.f32 %v806, %v807
  %v809 = vadd.f32 %v808, 1e-05
  %v810 = vrsqrt.pop %v809
  %v811 = vmul.f32 %v810, %v809
  %v812 = vmul.f32 %v811, %v810
  %v813 = vmul.f32 0.5, %v812
  %v814 = vsub.f32 1.5, %v813
  %v815 = vmul.f32 %v810, %v814
  %vm816 = vweird.f32 %v809
  %vm817 = vweird.f32 %v810
  %vm818 = vmor %vm816, %vm817
  %v819 = vsel %vm818, %v810, %v815
  %s820 = scalar_lea.vmem %s2, 20
  %v821 = vld [vmem:[%s820] sm:$0xf]
  %v822 = vmul.f32 %v819, %v821
  %824 = vset.pattern.permute.xlu0 0
  %825 = vperm.xlu0 %824, %v805
  %v826 = vpop.permute.xlu0 %825
  %v828 = vsub.f32 %v763, %v826
  %830 = vset.pattern.permute.xlu0 0
  %831 = vperm.xlu0 %830, %v822
  %v832 = vpop.permute.xlu0 %831
  %v834 = vmul.f32 %v828, %v832
  %s835 = scalar_lea.vmem %s3, 20
  %v836 = vld [vmem:[%s835] sm:$0xf]
  %838 = vset.pattern.permute.xlu0 0
  %839 = vperm.xlu0 %838, %v836
  %v840 = vpop.permute.xlu0 %839
  %v842 = vadd.f32 %v834, %v840
  %843 = vst [vmem:[%s4 + $0x14] sm:$0xf] %v842
  %v844 = vld [vmem:[%s0 + $0x18] sm:$0xf]
  %v845 = vadd.f32 %v842, %v844
  %846 = vrot.lane.b32.xlu0 %v845, 2
  %v847 = vpop.permute.xlu0 %846
  %v848 = vsel %vm34, %v847, 0.0
  %v849 = vsel %vm37, %v845, 0.0
  %850 = vrot.lane.b32.xlu0 %v845, 126
  %v851 = vpop.permute.xlu0 %850
  %v852 = vsel %vm41, %v851, 0.0
  %v854 = vrot.slane %v849, 4
  %v856 = vsel %vm118, %v848, %v854
  %v857 = vsel %vm118, %v852, 1.0
  %s858 = scalar_lea.vmem %s1, 24
  %v859 = vld [vmem:[%s858] sm:$0xf]
  %v861 = vsel %vm122, %v859, 0
  %v864 = vsel %vm126, %v857, 0
  %866 = vmatpush.msra.mxu0 0.0
  %867 = vmatpush.msra.mxu0 0.0
  %868 = vmatpush.msra.mxu0 0.0
  %869 = vmatpush.msra.mxu0 0.0
  %870 = vmatpush.msra.mxu0 0.0
  %871 = vmatpush.msra.mxu0 0.0
  %872 = vmatpush.msra.mxu0 0.0
  %873 = vmatpush.msra.mxu0 0.0
  %874 = vmatpush.msra.mxu0 0.0
  %875 = vmatpush.msra.mxu0 0.0
  %876 = vmatpush.msra.mxu0 0.0
  %877 = vmatpush.msra.mxu0 0.0
  %878 = vmatpush.msra.mxu0 0.0
  %879 = vmatpush.msra.mxu0 0.0
  %880 = vmatpush.msra.mxu0 %v864
  %881 = vmatpush.msra.mxu0 %v856
  %882 = vmatmul.f32.gmra.mxu0 %v861
  %v883 = vpop.f32.mrf.mxu0
  %v884 = vadd.f32 0.0, %v883
  %885 = vdwg.mxu0
  %v886 = vmax.f32 %v884, 0.0
  %887 = vmatpush.msra.mxu0 %v106
  %888 = vmatpush.msra.mxu0 %v105
  %889 = vmatpush.msra.mxu0 %v104
  %890 = vmatpush.msra.mxu0 %v103
  %891 = vmatpush.msra.mxu0 %v102
  %892 = vmatpush.msra.mxu0 %v101
  %893 = vmatpush.msra.mxu0 %v100
  %894 = vmatpush.msra.mxu0 %v99
  %895 = vmatpush.msra.mxu0 %v98
  %896 = vmatpush.msra.mxu0 %v97
  %897 = vmatpush.msra.mxu0 %v96
  %898 = vmatpush.msra.mxu0 %v95
  %899 = vmatpush.msra.mxu0 %v94
  %900 = vmatpush.msra.mxu0 %v93
  %901 = vmatpush.msra.mxu0 %v92
  %902 = vmatpush.msra.mxu0 %v91
  %903 = vmatmul.f32.gmra.mxu0 %v886
  %v904 = vpop.f32.mrf.mxu0
  %v905 = vadd.f32 0.0, %v904
  %906 = vdwg.mxu0
  %v907 = vmul.f32 %v886, %v886
  %908 = vmatpush.msra.mxu0 %v106
  %909 = vmatpush.msra.mxu0 %v105
  %910 = vmatpush.msra.mxu0 %v104
  %911 = vmatpush.msra.mxu0 %v103
  %912 = vmatpush.msra.mxu0 %v102
  %913 = vmatpush.msra.mxu0 %v101
  %914 = vmatpush.msra.mxu0 %v100
  %915 = vmatpush.msra.mxu0 %v99
  %916 = vmatpush.msra.mxu0 %v98
  %917 = vmatpush.msra.mxu0 %v97
  %918 = vmatpush.msra.mxu0 %v96
  %919 = vmatpush.msra.mxu0 %v95
  %920 = vmatpush.msra.mxu0 %v94
  %921 = vmatpush.msra.mxu0 %v93
  %922 = vmatpush.msra.mxu0 %v92
  %923 = vmatpush.msra.mxu0 %v91
  %924 = vmatmul.f32.gmra.mxu0 %v907
  %v925 = vpop.f32.mrf.mxu0
  %v926 = vadd.f32 0.0, %v925
  %927 = vdwg.mxu0
  %v928 = vmul.f32 %v905, 0.03125
  %v929 = vmul.f32 %v926, 0.03125
  %v930 = vmul.f32 %v928, %v928
  %v931 = vsub.f32 %v929, %v930
  %v932 = vadd.f32 %v931, 1e-05
  %v933 = vrsqrt.pop %v932
  %v934 = vmul.f32 %v933, %v932
  %v935 = vmul.f32 %v934, %v933
  %v936 = vmul.f32 0.5, %v935
  %v937 = vsub.f32 1.5, %v936
  %v938 = vmul.f32 %v933, %v937
  %vm939 = vweird.f32 %v932
  %vm940 = vweird.f32 %v933
  %vm941 = vmor %vm939, %vm940
  %v942 = vsel %vm941, %v933, %v938
  %s943 = scalar_lea.vmem %s2, 24
  %v944 = vld [vmem:[%s943] sm:$0xf]
  %v945 = vmul.f32 %v942, %v944
  %947 = vset.pattern.permute.xlu0 0
  %948 = vperm.xlu0 %947, %v928
  %v949 = vpop.permute.xlu0 %948
  %v951 = vsub.f32 %v886, %v949
  %953 = vset.pattern.permute.xlu0 0
  %954 = vperm.xlu0 %953, %v945
  %v955 = vpop.permute.xlu0 %954
  %v957 = vmul.f32 %v951, %v955
  %s958 = scalar_lea.vmem %s3, 24
  %v959 = vld [vmem:[%s958] sm:$0xf]
  %961 = vset.pattern.permute.xlu0 0
  %962 = vperm.xlu0 %961, %v959
  %v963 = vpop.permute.xlu0 %962
  %v965 = vadd.f32 %v957, %v963
  %966 = vst [vmem:[%s4 + $0x18] sm:$0xf] %v965
  %v967 = vld [vmem:[%s0 + $0x1c] sm:$0xf]
  %968 = vst [vmem:[%s4 + $0x1c] sm:$0xf] %v967
  // Predicated region
  $region18: #{res2conv1d.1} parent=0 // pred_check
    _
  $region19: #{res2conv1d.1} parent=0 // pred_check_branch
    %970 = sbr.rel (0) target = $region21
  $region20: #{res2conv1d.1} parent=0 // pred_region
    _
  $region21: #{res2conv1d.1} parent=0 // pred_fallthru
    _
  // Predicated region
  $region22: #{res2conv1d.1} parent=0 // pred_check
    _
  $region23: #{res2conv1d.1} parent=0 // pred_check_branch
    %972 = sbr.rel (0) target = $region25
  $region24: #{res2conv1d.1} parent=0 // pred_region
    _
  $region25: #{res2conv1d.1} parent=0 // pred_fallthru
    _

</llo_original>
